<compile_context>
chip_gen: v5e
topology: v5e:2x2
jax: 0.10.0
libtpu: 0.0.40
codegen_flags: <defaults>
</compile_context>

<pallas_src>
import functools

import jax
import jax.numpy as jnp
from jax.experimental import pallas as pl
from jax.experimental.pallas import tpu as pltpu

LANE = 128
SUB = 8
f32 = jnp.float32
bf16 = jnp.bfloat16


def _cdiv(a, b):
    return (a + b - 1) // b


def _round_up(x, m):
    return _cdiv(x, m) * m


def _pad2(a, rows, cols):
    """Zero-pad a 2D array to (rows, cols)."""
    return jnp.zeros((rows, cols), a.dtype).at[: a.shape[0], : a.shape[1]].set(a)


def _pick_k_tiling(chw, k_cap=16384):
    """Return (TK, CHW_padded). Prefer no feature-dim padding of the image."""
    if chw <= k_cap:
        return chw, chw                      # single K step, block == full dim
    cap = (k_cap // LANE) * LANE
    for chw_p in (chw, _round_up(chw, LANE)):
        t = cap
        while t >= LANE:
            if chw_p % t == 0:
                return t, chw_p
            t -= LANE
    return LANE, _round_up(chw, LANE)


def _pick_tb(B, TK, img_bytes=4, budget=12 * 1024 * 1024, tb_cap=512):
    """Batch tile: VMEM-budgeted (double-buffered f32 img tile), >=2 tiles when possible."""
    if B <= SUB:
        return B                             # one full-batch block (block == full dim)
    tb = budget // (2 * img_bytes * TK)      # double-buffered img tile budget
    tb = max(SUB, (min(tb_cap, tb) // SUB) * SUB)
    tb = min(tb, _round_up(_cdiv(B, 2), SUB))   # >= 2 batch tiles -> both TCs on v7x
    tb = max(SUB, min(tb, _round_up(B, SUB)))
    return tb


@functools.partial(jax.jit, static_argnames=("single_buffer_weights",))
def _forward_impl(question, mask, img, lidar, params, single_buffer_weights=True):
    B, S, E = question.shape
    CHW = img.shape[1] * img.shape[2] * img.shape[3]
    D_LIDAR = lidar.shape[1]
    D_IMG = params["w_rgb"].shape[1]
    D_TXT = params["w_txt"].shape[1]
    HID = params["w1_img"].shape[1]
    NCLS = params["w2"].shape[1]

    SE = S * E
    FP_IMG = _round_up(D_IMG, LANE)
    FP_TXT = _round_up(D_TXT, LANE)
    FP_LID = _round_up(D_LIDAR, LANE)
    HID_P = _round_up(HID, LANE)
    NOUT_P = _round_up(NCLS, LANE)

    TK, CHW_P = _pick_k_tiling(CHW)
    n_k = CHW_P // TK
    TB = _pick_tb(B, TK)
    n_b = _cdiv(B, TB)

    # ---------------- activation prep (wrapper glue) ----------------
    # img: contiguous reshape, stays f32 (no padded bf16 copy); bf16 cast is in-kernel.
    img_flat = img.reshape(B, CHW).astype(f32)
    if CHW_P != CHW:
        img_flat = _pad2(img_flat, B, CHW_P)     # only when CHW needs lane padding
    m = mask.astype(f32)
    w_norm = m / jnp.maximum(jnp.sum(m, axis=1, keepdims=True), 1e-6)       # [B, S]
    # fold normalized mask weights into the question; flatten -> lane-dense 2D block
    q_flat = (question.astype(f32) * w_norm[:, :, None]).astype(bf16).reshape(B, SE)
    lidar_p = _pad2(lidar.astype(f32), B, FP_LID).astype(bf16)

    # ---------------- parameter prep (wrapper glue) ----------------
    # zero-padding (incl. w_rgb's K tail) keeps padded lanes exactly 0 after ReLU
    w_rgb = _pad2(params["w_rgb"].astype(f32), CHW_P, FP_IMG).astype(bf16)
    b_rgb = _pad2(params["b_rgb"].astype(f32).reshape(1, -1), 1, FP_IMG)
    # masked-pool + linear fused into one dot: stack w_txt S times -> [S*E, FP_TXT]
    w_txt_s = jnp.tile(_pad2(params["w_txt"].astype(f32), E, FP_TXT), (S, 1)).astype(bf16)
    b_txt = _pad2(params["b_txt"].astype(f32).reshape(1, -1), 1, FP_TXT)
    w1_img = _pad2(params["w1_img"].astype(f32), FP_IMG, HID_P).astype(bf16)
    w1_txt = _pad2(params["w1_txt"].astype(f32), FP_TXT, HID_P).astype(bf16)
    w1_lid = _pad2(params["w1_lid"].astype(f32), FP_LID, HID_P).astype(bf16)
    b1 = _pad2(params["b1"].astype(f32).reshape(1, -1), 1, HID_P)
    w2 = _pad2(params["w2"].astype(f32), HID_P, NOUT_P).astype(bf16)
    b2 = _pad2(params["b2"].astype(f32).reshape(1, -1), 1, NOUT_P)

    # ---------------- fused kernel ----------------
    def kernel(img_ref, q_ref, lid_ref,
               w_rgb_ref, b_rgb_ref, w_txt_ref, b_txt_ref,
               w1i_ref, w1t_ref, w1l_ref, b1_ref, w2_ref, b2_ref,
               out_ref, acc_ref):
        k = pl.program_id(1)

        @pl.when(k == 0)
        def _init():
            acc_ref[...] = jnp.zeros_like(acc_ref)

        # rgb_encoder contraction over this CHW slice: in-kernel bf16 cast of the
        # f32 image tile, bf16 MXU, f32 accumulation in VMEM scratch.
        acc_ref[...] += jnp.dot(img_ref[...].astype(bf16), w_rgb_ref[...],
                                preferred_element_type=f32)

        @pl.when(k == pl.num_programs(1) - 1)
        def _finalize():
            img_feat = jnp.maximum(acc_ref[...] + b_rgb_ref[...], 0.0)     # [TB, FP_IMG]

            # text_encoder: masked mean-pool (mask pre-folded, w_txt stacked) -> ReLU
            txt_feat = jnp.maximum(
                jnp.dot(q_ref[...], w_txt_ref[...], preferred_element_type=f32)
                + b_txt_ref[...], 0.0)                                      # [TB, FP_TXT]

            # predictor: cat(img, txt, lidar) @ W1 == three accumulated dots
            h = (jnp.dot(img_feat.astype(bf16), w1i_ref[...], preferred_element_type=f32)
                 + jnp.dot(txt_feat.astype(bf16), w1t_ref[...], preferred_element_type=f32)
                 + jnp.dot(lid_ref[...], w1l_ref[...], preferred_element_type=f32)
                 + b1_ref[...])
            h = jnp.maximum(h, 0.0)                                         # [TB, HID_P]
            out_ref[...] = (jnp.dot(h.astype(bf16), w2_ref[...],
                                    preferred_element_type=f32) + b2_ref[...])

    def _weight_spec(shape):
        if single_buffer_weights:
            return pl.BlockSpec(shape, lambda i, k: (0, 0),
                                pipeline_mode=pl.Buffered(1))
        return pl.BlockSpec(shape, lambda i, k: (0, 0))

    in_specs = [
        pl.BlockSpec((TB, TK), lambda i, k: (i, k)),          # img (f32, streamed over K)
        pl.BlockSpec((TB, SE), lambda i, k: (i, 0)),          # mask-weighted question
        pl.BlockSpec((TB, FP_LID), lambda i, k: (i, 0)),      # lidar (padded, bf16)
        pl.BlockSpec((TK, FP_IMG), lambda i, k: (k, 0)),      # w_rgb (streamed over K)
        _weight_spec((1, FP_IMG)),                            # b_rgb
        _weight_spec((SE, FP_TXT)),                           # stacked w_txt
        _weight_spec((1, FP_TXT)),                            # b_txt
        _weight_spec((FP_IMG, HID_P)),                        # w1_img
        _weight_spec((FP_TXT, HID_P)),                        # w1_txt
        _weight_spec((FP_LID, HID_P)),                        # w1_lid
        _weight_spec((1, HID_P)),                             # b1
        _weight_spec((HID_P, NOUT_P)),                        # w2
        _weight_spec((1, NOUT_P)),                            # b2
    ]
    out_spec = pl.BlockSpec((TB, NOUT_P), lambda i, k: (i, 0))

    out_padded = pl.pallas_call(
        kernel,
        out_shape=jax.ShapeDtypeStruct((B, NOUT_P), f32),
        grid=(n_b, n_k),
        in_specs=in_specs,
        out_specs=out_spec,
        scratch_shapes=[pltpu.VMEM((TB, FP_IMG), f32)],       # img_feat accumulator
        compiler_params=pltpu.CompilerParams(
            dimension_semantics=("parallel", "arbitrary"),    # batch across TCs, K sequential
            vmem_limit_bytes=32 * 1024 * 1024,
        ),
    )(img_flat, q_flat, lidar_p, w_rgb, b_rgb, w_txt_s, b_txt,
      w1_img, w1_txt, w1_lid, b1, w2, b2)

    return out_padded[:, :NCLS]


def baseline_forward(question, mask, img, lidar, params):
    """question: [B,S,E], mask: [B,S], img: [B,C,H,W], lidar: [B,D_lidar]."""
    try:
        return _forward_impl(question, mask, img, lidar, params,
                             single_buffer_weights=True)
    except Exception:
        # Fallback if pipeline_mode=pl.Buffered(1) is unsupported by this jax build.
        return _forward_impl(question, mask, img, lidar, params,
                             single_buffer_weights=False)


def _reference(question, mask, img, lidar, p):
    """Pure-JAX f32 reference of the original module semantics."""
    B = img.shape[0]
    img_feat = jnp.maximum(img.reshape(B, -1) @ p["w_rgb"] + p["b_rgb"], 0.0)
    m = mask[:, :, None]
    pooled = jnp.sum(question * m, axis=1) / jnp.maximum(jnp.sum(m, axis=1), 1e-6)
    txt_feat = jnp.maximum(pooled @ p["w_txt"] + p["b_txt"], 0.0)
    nn_input = jnp.concatenate([img_feat, txt_feat, lidar], axis=1)
    w1 = jnp.concatenate([p["w1_img"], p["w1_txt"], p["w1_lid"]], axis=0)
    h = jnp.maximum(nn_input @ w1 + p["b1"], 0.0)
    return h @ p["w2"] + p["b2"]


if __name__ == "__main__":
    # Small, module-consistent shapes.
    B, C, H, W = 2, 4, 16, 16       # img (NCHW)
    S, E = 8, 32                    # question seq length, embedding dim
    D_LIDAR = 16
    D_IMG, D_TXT = 32, 32           # encoder feature dims
    HID, NCLS = 64, 10              # predictor hidden, output classes

    key = jax.random.PRNGKey(0)
    keys = jax.random.split(key, 12)

    params = {
        "w_rgb":  0.02 * jax.random.normal(keys[0], (C * H * W, D_IMG), jnp.float32),
        "b_rgb":  jnp.zeros((1, D_IMG), jnp.float32),
        "w_txt":  0.05 * jax.random.normal(keys[1], (E, D_TXT), jnp.float32),
        "b_txt":  jnp.zeros((1, D_TXT), jnp.float32),
        "w1_img": 0.05 * jax.random.normal(keys[2], (D_IMG, HID), jnp.float32),
        "w1_txt": 0.05 * jax.random.normal(keys[3], (D_TXT, HID), jnp.float32),
        "w1_lid": 0.05 * jax.random.normal(keys[4], (D_LIDAR, HID), jnp.float32),
        "b1":     jnp.zeros((1, HID), jnp.float32),
        "w2":     0.05 * jax.random.normal(keys[5], (HID, NCLS), jnp.float32),
        "b2":     jnp.zeros((1, NCLS), jnp.float32),
    }

    img = jax.random.normal(keys[6], (B, C, H, W), jnp.float32)
    question = jax.random.normal(keys[7], (B, S, E), jnp.float32)
    mask = (jax.random.uniform(keys[8], (B, S)) > 0.3).astype(jnp.float32)
    mask = mask.at[:, 0].set(1.0)   # ensure at least one valid token per row
    lidar = jax.random.normal(keys[9], (B, D_LIDAR), jnp.float32)

    out = baseline_forward(question, mask, img, lidar, params)
    out = jax.block_until_ready(out)

    ref = _reference(question, mask, img, lidar, params)
    assert out.shape == (B, NCLS)
    # bf16 weights/activations with f32 accumulation -> compare with a loose tolerance.
    assert jnp.allclose(out, ref, atol=2.5e-2, rtol=2.5e-2), "mismatch vs pure-JAX reference"

    print("KERNEL_OK")
</pallas_src>

<mosaic_0001>
module attributes {stable_mosaic.version = 11 : i64} {
  func.func @kernel(%arg0: i32, %arg1: i32, %arg2: memref<2x1024xf32, #tpu.memory_space<vmem>>, %arg3: memref<2x256xbf16, #tpu.memory_space<vmem>>, %arg4: memref<2x128xbf16, #tpu.memory_space<vmem>>, %arg5: memref<1024x128xbf16, #tpu.memory_space<vmem>>, %arg6: memref<1x128xf32, #tpu.memory_space<vmem>>, %arg7: memref<256x128xbf16, #tpu.memory_space<vmem>>, %arg8: memref<1x128xf32, #tpu.memory_space<vmem>>, %arg9: memref<128x128xbf16, #tpu.memory_space<vmem>>, %arg10: memref<128x128xbf16, #tpu.memory_space<vmem>>, %arg11: memref<128x128xbf16, #tpu.memory_space<vmem>>, %arg12: memref<1x128xf32, #tpu.memory_space<vmem>>, %arg13: memref<128x128xbf16, #tpu.memory_space<vmem>>, %arg14: memref<1x128xf32, #tpu.memory_space<vmem>>, %arg15: memref<2x128xf32, #tpu.memory_space<vmem>>, %arg16: memref<2x128xf32, #tpu.memory_space<vmem>>) attributes {dimension_semantics = [#tpu.dimension_semantics<parallel>, #tpu.dimension_semantics<arbitrary>], iteration_bounds = array<i64: 1, 1>, scalar_prefetch = 0 : i64, scratch_operands = 1 : i64, tpu.core_type = #tpu.core_type<tc>, window_params = [{transform_indices = @transform_0, window_bounds = array<i64: 2, 1024>}, {transform_indices = @transform_1, window_bounds = array<i64: 2, 256>}, {transform_indices = @transform_2, window_bounds = array<i64: 2, 128>}, {transform_indices = @transform_3, window_bounds = array<i64: 1024, 128>}, {pipeline_mode = #tpu.pipeline_mode<synchronous>, transform_indices = @transform_4, window_bounds = array<i64: 1, 128>}, {pipeline_mode = #tpu.pipeline_mode<synchronous>, transform_indices = @transform_5, window_bounds = array<i64: 256, 128>}, {pipeline_mode = #tpu.pipeline_mode<synchronous>, transform_indices = @transform_6, window_bounds = array<i64: 1, 128>}, {pipeline_mode = #tpu.pipeline_mode<synchronous>, transform_indices = @transform_7, window_bounds = array<i64: 128, 128>}, {pipeline_mode = #tpu.pipeline_mode<synchronous>, transform_indices = @transform_8, window_bounds = array<i64: 128, 128>}, {pipeline_mode = #tpu.pipeline_mode<synchronous>, transform_indices = @transform_9, window_bounds = array<i64: 128, 128>}, {pipeline_mode = #tpu.pipeline_mode<synchronous>, transform_indices = @transform_10, window_bounds = array<i64: 1, 128>}, {pipeline_mode = #tpu.pipeline_mode<synchronous>, transform_indices = @transform_11, window_bounds = array<i64: 128, 128>}, {pipeline_mode = #tpu.pipeline_mode<synchronous>, transform_indices = @transform_12, window_bounds = array<i64: 1, 128>}, {transform_indices = @transform_13, window_bounds = array<i64: 2, 128>}]} {
    %c0_i32 = arith.constant 0 : i32
    %0 = arith.cmpi eq, %arg1, %c0_i32 : i32
    %1 = arith.extui %0 : i1 to i32
    %c0_i32_0 = arith.constant 0 : i32
    %2 = arith.cmpi ne, %1, %c0_i32_0 : i32
    scf.if %2 {
      %cst_10 = arith.constant 0.000000e+00 : f32
      %13 = vector.broadcast %cst_10 : f32 to vector<2x128xf32>
      %c0_11 = arith.constant 0 : index
      %c0_12 = arith.constant 0 : index
      %14 = vector.load %arg16[%c0_11, %c0_12] : memref<2x128xf32, #tpu.memory_space<vmem>>, vector<2x128xf32>
      tpu.vector_store %arg16[%c0_11, %c0_12], %13 {strides = array<i32>} : memref<2x128xf32, #tpu.memory_space<vmem>>, vector<2x128xf32>,
    } else {
    }
    %c0 = arith.constant 0 : index
    %c0_1 = arith.constant 0 : index
    %3 = vector.load %arg16[%c0, %c0_1] : memref<2x128xf32, #tpu.memory_space<vmem>>, vector<2x128xf32>
    %c0_2 = arith.constant 0 : index
    %c0_3 = arith.constant 0 : index
    %4 = vector.load %arg2[%c0_2, %c0_3] : memref<2x1024xf32, #tpu.memory_space<vmem>>, vector<2x1024xf32>
    %5 = arith.truncf %4 : vector<2x1024xf32> to vector<2x1024xbf16>
    %c0_4 = arith.constant 0 : index
    %c0_5 = arith.constant 0 : index
    %6 = vector.load %arg5[%c0_4, %c0_5] : memref<1024x128xbf16, #tpu.memory_space<vmem>>, vector<1024x128xbf16>
    %cst = arith.constant dense<0.000000e+00> : vector<2x128xf32>
    %7 = tpu.matmul %5, %6, %cst {dimension_numbers = #tpu.dot_dimension_numbers<[1], [0], [0], [1], [0, 0, 1, 1], [], []>} : vector<2x1024xbf16>, vector<1024x128xbf16>, vector<2x128xf32> -> vector<2x128xf32>
    %8 = arith.addf %3, %7 : vector<2x128xf32>
    %c0_6 = arith.constant 0 : index
    %c0_7 = arith.constant 0 : index
    %9 = vector.load %arg16[%c0_6, %c0_7] : memref<2x128xf32, #tpu.memory_space<vmem>>, vector<2x128xf32>
    tpu.vector_store %arg16[%c0_6, %c0_7], %8 {strides = array<i32>} : memref<2x128xf32, #tpu.memory_space<vmem>>, vector<2x128xf32>,
    %c0_i32_8 = arith.constant 0 : i32
    %10 = arith.cmpi eq, %arg1, %c0_i32_8 : i32
    %11 = arith.extui %10 : i1 to i32
    %c0_i32_9 = arith.constant 0 : i32
    %12 = arith.cmpi ne, %11, %c0_i32_9 : i32
    scf.if %12 {
      %c0_10 = arith.constant 0 : index
      %c0_11 = arith.constant 0 : index
      %13 = vector.load %arg16[%c0_10, %c0_11] : memref<2x128xf32, #tpu.memory_space<vmem>>, vector<2x128xf32>
      %c0_12 = arith.constant 0 : index
      %c0_13 = arith.constant 0 : index
      %14 = vector.load %arg6[%c0_12, %c0_13] : memref<1x128xf32, #tpu.memory_space<vmem>>, vector<1x128xf32>
      %15 = vector.broadcast %14 : vector<1x128xf32> to vector<2x128xf32>
      %16 = arith.addf %13, %15 : vector<2x128xf32>
      %cst_14 = arith.constant 0.000000e+00 : f32
      %17 = vector.broadcast %cst_14 : f32 to vector<2x128xf32>
      %18 = arith.maximumf %16, %17 : vector<2x128xf32>
      %c0_15 = arith.constant 0 : index
      %c0_16 = arith.constant 0 : index
      %19 = vector.load %arg3[%c0_15, %c0_16] : memref<2x256xbf16, #tpu.memory_space<vmem>>, vector<2x256xbf16>
      %c0_17 = arith.constant 0 : index
      %c0_18 = arith.constant 0 : index
      %20 = vector.load %arg7[%c0_17, %c0_18] : memref<256x128xbf16, #tpu.memory_space<vmem>>, vector<256x128xbf16>
      %cst_19 = arith.constant dense<0.000000e+00> : vector<2x128xf32>
      %21 = tpu.matmul %19, %20, %cst_19 {dimension_numbers = #tpu.dot_dimension_numbers<[1], [0], [0], [1], [0, 0, 1, 1], [], []>} : vector<2x256xbf16>, vector<256x128xbf16>, vector<2x128xf32> -> vector<2x128xf32>
      %c0_20 = arith.constant 0 : index
      %c0_21 = arith.constant 0 : index
      %22 = vector.load %arg8[%c0_20, %c0_21] : memref<1x128xf32, #tpu.memory_space<vmem>>, vector<1x128xf32>
      %23 = vector.broadcast %22 : vector<1x128xf32> to vector<2x128xf32>
      %24 = arith.addf %21, %23 : vector<2x128xf32>
      %cst_22 = arith.constant 0.000000e+00 : f32
      %25 = vector.broadcast %cst_22 : f32 to vector<2x128xf32>
      %26 = arith.maximumf %24, %25 : vector<2x128xf32>
      %27 = arith.truncf %18 : vector<2x128xf32> to vector<2x128xbf16>
      %c0_23 = arith.constant 0 : index
      %c0_24 = arith.constant 0 : index
      %28 = vector.load %arg9[%c0_23, %c0_24] : memref<128x128xbf16, #tpu.memory_space<vmem>>, vector<128x128xbf16>
      %cst_25 = arith.constant dense<0.000000e+00> : vector<2x128xf32>
      %29 = tpu.matmul %27, %28, %cst_25 {dimension_numbers = #tpu.dot_dimension_numbers<[1], [0], [0], [1], [0, 0, 1, 1], [], []>} : vector<2x128xbf16>, vector<128x128xbf16>, vector<2x128xf32> -> vector<2x128xf32>
      %30 = arith.truncf %26 : vector<2x128xf32> to vector<2x128xbf16>
      %c0_26 = arith.constant 0 : index
      %c0_27 = arith.constant 0 : index
      %31 = vector.load %arg10[%c0_26, %c0_27] : memref<128x128xbf16, #tpu.memory_space<vmem>>, vector<128x128xbf16>
      %cst_28 = arith.constant dense<0.000000e+00> : vector<2x128xf32>
      %32 = tpu.matmul %30, %31, %cst_28 {dimension_numbers = #tpu.dot_dimension_numbers<[1], [0], [0], [1], [0, 0, 1, 1], [], []>} : vector<2x128xbf16>, vector<128x128xbf16>, vector<2x128xf32> -> vector<2x128xf32>
      %33 = arith.addf %29, %32 : vector<2x128xf32>
      %c0_29 = arith.constant 0 : index
      %c0_30 = arith.constant 0 : index
      %34 = vector.load %arg4[%c0_29, %c0_30] : memref<2x128xbf16, #tpu.memory_space<vmem>>, vector<2x128xbf16>
      %c0_31 = arith.constant 0 : index
      %c0_32 = arith.constant 0 : index
      %35 = vector.load %arg11[%c0_31, %c0_32] : memref<128x128xbf16, #tpu.memory_space<vmem>>, vector<128x128xbf16>
      %cst_33 = arith.constant dense<0.000000e+00> : vector<2x128xf32>
      %36 = tpu.matmul %34, %35, %cst_33 {dimension_numbers = #tpu.dot_dimension_numbers<[1], [0], [0], [1], [0, 0, 1, 1], [], []>} : vector<2x128xbf16>, vector<128x128xbf16>, vector<2x128xf32> -> vector<2x128xf32>
      %37 = arith.addf %33, %36 : vector<2x128xf32>
      %c0_34 = arith.constant 0 : index
      %c0_35 = arith.constant 0 : index
      %38 = vector.load %arg12[%c0_34, %c0_35] : memref<1x128xf32, #tpu.memory_space<vmem>>, vector<1x128xf32>
      %39 = vector.broadcast %38 : vector<1x128xf32> to vector<2x128xf32>
      %40 = arith.addf %37, %39 : vector<2x128xf32>
      %cst_36 = arith.constant 0.000000e+00 : f32
      %41 = vector.broadcast %cst_36 : f32 to vector<2x128xf32>
      %42 = arith.maximumf %40, %41 : vector<2x128xf32>
      %43 = arith.truncf %42 : vector<2x128xf32> to vector<2x128xbf16>
      %c0_37 = arith.constant 0 : index
      %c0_38 = arith.constant 0 : index
      %44 = vector.load %arg13[%c0_37, %c0_38] : memref<128x128xbf16, #tpu.memory_space<vmem>>, vector<128x128xbf16>
      %cst_39 = arith.constant dense<0.000000e+00> : vector<2x128xf32>
      %45 = tpu.matmul %43, %44, %cst_39 {dimension_numbers = #tpu.dot_dimension_numbers<[1], [0], [0], [1], [0, 0, 1, 1], [], []>} : vector<2x128xbf16>, vector<128x128xbf16>, vector<2x128xf32> -> vector<2x128xf32>
      %c0_40 = arith.constant 0 : index
      %c0_41 = arith.constant 0 : index
      %46 = vector.load %arg14[%c0_40, %c0_41] : memref<1x128xf32, #tpu.memory_space<vmem>>, vector<1x128xf32>
      %47 = vector.broadcast %46 : vector<1x128xf32> to vector<2x128xf32>
      %48 = arith.addf %45, %47 : vector<2x128xf32>
      %c0_42 = arith.constant 0 : index
      %c0_43 = arith.constant 0 : index
      %49 = vector.load %arg15[%c0_42, %c0_43] : memref<2x128xf32, #tpu.memory_space<vmem>>, vector<2x128xf32>
      tpu.vector_store %arg15[%c0_42, %c0_43], %48 {strides = array<i32>} : memref<2x128xf32, #tpu.memory_space<vmem>>, vector<2x128xf32>,
    } else {
    }
    return
  }
  func.func @transform_0(%arg0: i32, %arg1: i32) -> (i32, i32) {
    %c0_i32 = arith.constant 0 : i32
    return %arg0, %arg1 : i32, i32
  }
  func.func @transform_1(%arg0: i32, %arg1: i32) -> (i32, i32) {
    %c0_i32 = arith.constant 0 : i32
    %c0_i32_0 = arith.constant 0 : i32
    return %arg0, %c0_i32 : i32, i32
  }
  func.func @transform_2(%arg0: i32, %arg1: i32) -> (i32, i32) {
    %c0_i32 = arith.constant 0 : i32
    %c0_i32_0 = arith.constant 0 : i32
    return %arg0, %c0_i32 : i32, i32
  }
  func.func @transform_3(%arg0: i32, %arg1: i32) -> (i32, i32) {
    %c0_i32 = arith.constant 0 : i32
    %c0_i32_0 = arith.constant 0 : i32
    return %arg1, %c0_i32 : i32, i32
  }
  func.func @transform_4(%arg0: i32, %arg1: i32) -> (i32, i32) {
    %c0_i32 = arith.constant 0 : i32
    %c0_i32_0 = arith.constant 0 : i32
    %c0_i32_1 = arith.constant 0 : i32
    return %c0_i32, %c0_i32_0 : i32, i32
  }
  func.func @transform_5(%arg0: i32, %arg1: i32) -> (i32, i32) {
    %c0_i32 = arith.constant 0 : i32
    %c0_i32_0 = arith.constant 0 : i32
    %c0_i32_1 = arith.constant 0 : i32
    return %c0_i32, %c0_i32_0 : i32, i32
  }
  func.func @transform_6(%arg0: i32, %arg1: i32) -> (i32, i32) {
    %c0_i32 = arith.constant 0 : i32
    %c0_i32_0 = arith.constant 0 : i32
    %c0_i32_1 = arith.constant 0 : i32
    return %c0_i32, %c0_i32_0 : i32, i32
  }
  func.func @transform_7(%arg0: i32, %arg1: i32) -> (i32, i32) {
    %c0_i32 = arith.constant 0 : i32
    %c0_i32_0 = arith.constant 0 : i32
    %c0_i32_1 = arith.constant 0 : i32
    return %c0_i32, %c0_i32_0 : i32, i32
  }
  func.func @transform_8(%arg0: i32, %arg1: i32) -> (i32, i32) {
    %c0_i32 = arith.constant 0 : i32
    %c0_i32_0 = arith.constant 0 : i32
    %c0_i32_1 = arith.constant 0 : i32
    return %c0_i32, %c0_i32_0 : i32, i32
  }
  func.func @transform_9(%arg0: i32, %arg1: i32) -> (i32, i32) {
    %c0_i32 = arith.constant 0 : i32
    %c0_i32_0 = arith.constant 0 : i32
    %c0_i32_1 = arith.constant 0 : i32
    return %c0_i32, %c0_i32_0 : i32, i32
  }
  func.func @transform_10(%arg0: i32, %arg1: i32) -> (i32, i32) {
    %c0_i32 = arith.constant 0 : i32
    %c0_i32_0 = arith.constant 0 : i32
    %c0_i32_1 = arith.constant 0 : i32
    return %c0_i32, %c0_i32_0 : i32, i32
  }
  func.func @transform_11(%arg0: i32, %arg1: i32) -> (i32, i32) {
    %c0_i32 = arith.constant 0 : i32
    %c0_i32_0 = arith.constant 0 : i32
    %c0_i32_1 = arith.constant 0 : i32
    return %c0_i32, %c0_i32_0 : i32, i32
  }
  func.func @transform_12(%arg0: i32, %arg1: i32) -> (i32, i32) {
    %c0_i32 = arith.constant 0 : i32
    %c0_i32_0 = arith.constant 0 : i32
    %c0_i32_1 = arith.constant 0 : i32
    return %c0_i32, %c0_i32_0 : i32, i32
  }
  func.func @transform_13(%arg0: i32, %arg1: i32) -> (i32, i32) {
    %c0_i32 = arith.constant 0 : i32
    %c0_i32_0 = arith.constant 0 : i32
    return %arg0, %c0_i32 : i32, i32
  }
}

module attributes {stable_mosaic.version = 11 : i64} {
  func.func @kernel(%arg0: i32, %arg1: i32, %arg2: memref<2x1024xf32, #tpu.memory_space<vmem>>, %arg3: memref<2x256xbf16, #tpu.memory_space<vmem>>, %arg4: memref<2x128xbf16, #tpu.memory_space<vmem>>, %arg5: memref<1024x128xbf16, #tpu.memory_space<vmem>>, %arg6: memref<1x128xf32, #tpu.memory_space<vmem>>, %arg7: memref<256x128xbf16, #tpu.memory_space<vmem>>, %arg8: memref<1x128xf32, #tpu.memory_space<vmem>>, %arg9: memref<128x128xbf16, #tpu.memory_space<vmem>>, %arg10: memref<128x128xbf16, #tpu.memory_space<vmem>>, %arg11: memref<128x128xbf16, #tpu.memory_space<vmem>>, %arg12: memref<1x128xf32, #tpu.memory_space<vmem>>, %arg13: memref<128x128xbf16, #tpu.memory_space<vmem>>, %arg14: memref<1x128xf32, #tpu.memory_space<vmem>>, %arg15: memref<2x128xf32, #tpu.memory_space<vmem>>, %arg16: memref<2x128xf32, #tpu.memory_space<vmem>>) attributes {dimension_semantics = [#tpu.dimension_semantics<parallel>, #tpu.dimension_semantics<arbitrary>], iteration_bounds = array<i64: 1, 1>, scalar_prefetch = 0 : i64, scratch_operands = 1 : i64, tpu.core_type = #tpu.core_type<tc>, window_params = [{transform_indices = @transform_0, window_bounds = array<i64: 2, 1024>}, {transform_indices = @transform_1, window_bounds = array<i64: 2, 256>}, {transform_indices = @transform_2, window_bounds = array<i64: 2, 128>}, {transform_indices = @transform_3, window_bounds = array<i64: 1024, 128>}, {pipeline_mode = #tpu.pipeline_mode<synchronous>, transform_indices = @transform_4, window_bounds = array<i64: 1, 128>}, {pipeline_mode = #tpu.pipeline_mode<synchronous>, transform_indices = @transform_5, window_bounds = array<i64: 256, 128>}, {pipeline_mode = #tpu.pipeline_mode<synchronous>, transform_indices = @transform_6, window_bounds = array<i64: 1, 128>}, {pipeline_mode = #tpu.pipeline_mode<synchronous>, transform_indices = @transform_7, window_bounds = array<i64: 128, 128>}, {pipeline_mode = #tpu.pipeline_mode<synchronous>, transform_indices = @transform_8, window_bounds = array<i64: 128, 128>}, {pipeline_mode = #tpu.pipeline_mode<synchronous>, transform_indices = @transform_9, window_bounds = array<i64: 128, 128>}, {pipeline_mode = #tpu.pipeline_mode<synchronous>, transform_indices = @transform_10, window_bounds = array<i64: 1, 128>}, {pipeline_mode = #tpu.pipeline_mode<synchronous>, transform_indices = @transform_11, window_bounds = array<i64: 128, 128>}, {pipeline_mode = #tpu.pipeline_mode<synchronous>, transform_indices = @transform_12, window_bounds = array<i64: 1, 128>}, {transform_indices = @transform_13, window_bounds = array<i64: 2, 128>}]} {
    %c0_i32 = arith.constant 0 : i32
    %0 = arith.cmpi eq, %arg1, %c0_i32 : i32
    %1 = arith.extui %0 : i1 to i32
    %c0_i32_0 = arith.constant 0 : i32
    %2 = arith.cmpi ne, %1, %c0_i32_0 : i32
    scf.if %2 {
      %cst_10 = arith.constant 0.000000e+00 : f32
      %13 = vector.broadcast %cst_10 : f32 to vector<2x128xf32>
      %c0_11 = arith.constant 0 : index
      %c0_12 = arith.constant 0 : index
      %14 = vector.load %arg16[%c0_11, %c0_12] : memref<2x128xf32, #tpu.memory_space<vmem>>, vector<2x128xf32>
      tpu.vector_store %arg16[%c0_11, %c0_12], %13 {strides = array<i32>} : memref<2x128xf32, #tpu.memory_space<vmem>>, vector<2x128xf32>,
    } else {
    }
    %c0 = arith.constant 0 : index
    %c0_1 = arith.constant 0 : index
    %3 = vector.load %arg16[%c0, %c0_1] : memref<2x128xf32, #tpu.memory_space<vmem>>, vector<2x128xf32>
    %c0_2 = arith.constant 0 : index
    %c0_3 = arith.constant 0 : index
    %4 = vector.load %arg2[%c0_2, %c0_3] : memref<2x1024xf32, #tpu.memory_space<vmem>>, vector<2x1024xf32>
    %5 = arith.truncf %4 : vector<2x1024xf32> to vector<2x1024xbf16>
    %c0_4 = arith.constant 0 : index
    %c0_5 = arith.constant 0 : index
    %6 = vector.load %arg5[%c0_4, %c0_5] : memref<1024x128xbf16, #tpu.memory_space<vmem>>, vector<1024x128xbf16>
    %cst = arith.constant dense<0.000000e+00> : vector<2x128xf32>
    %7 = tpu.matmul %5, %6, %cst {dimension_numbers = #tpu.dot_dimension_numbers<[1], [0], [0], [1], [0, 0, 1, 1], [], []>} : vector<2x1024xbf16>, vector<1024x128xbf16>, vector<2x128xf32> -> vector<2x128xf32>
    %8 = arith.addf %3, %7 : vector<2x128xf32>
    %c0_6 = arith.constant 0 : index
    %c0_7 = arith.constant 0 : index
    %9 = vector.load %arg16[%c0_6, %c0_7] : memref<2x128xf32, #tpu.memory_space<vmem>>, vector<2x128xf32>
    tpu.vector_store %arg16[%c0_6, %c0_7], %8 {strides = array<i32>} : memref<2x128xf32, #tpu.memory_space<vmem>>, vector<2x128xf32>,
    %c0_i32_8 = arith.constant 0 : i32
    %10 = arith.cmpi eq, %arg1, %c0_i32_8 : i32
    %11 = arith.extui %10 : i1 to i32
    %c0_i32_9 = arith.constant 0 : i32
    %12 = arith.cmpi ne, %11, %c0_i32_9 : i32
    scf.if %12 {
      %c0_10 = arith.constant 0 : index
      %c0_11 = arith.constant 0 : index
      %13 = vector.load %arg16[%c0_10, %c0_11] : memref<2x128xf32, #tpu.memory_space<vmem>>, vector<2x128xf32>
      %c0_12 = arith.constant 0 : index
      %c0_13 = arith.constant 0 : index
      %14 = vector.load %arg6[%c0_12, %c0_13] : memref<1x128xf32, #tpu.memory_space<vmem>>, vector<1x128xf32>
      %15 = vector.broadcast %14 : vector<1x128xf32> to vector<2x128xf32>
      %16 = arith.addf %13, %15 : vector<2x128xf32>
      %cst_14 = arith.constant 0.000000e+00 : f32
      %17 = vector.broadcast %cst_14 : f32 to vector<2x128xf32>
      %18 = arith.maximumf %16, %17 : vector<2x128xf32>
      %c0_15 = arith.constant 0 : index
      %c0_16 = arith.constant 0 : index
      %19 = vector.load %arg3[%c0_15, %c0_16] : memref<2x256xbf16, #tpu.memory_space<vmem>>, vector<2x256xbf16>
      %c0_17 = arith.constant 0 : index
      %c0_18 = arith.constant 0 : index
      %20 = vector.load %arg7[%c0_17, %c0_18] : memref<256x128xbf16, #tpu.memory_space<vmem>>, vector<256x128xbf16>
      %cst_19 = arith.constant dense<0.000000e+00> : vector<2x128xf32>
      %21 = tpu.matmul %19, %20, %cst_19 {dimension_numbers = #tpu.dot_dimension_numbers<[1], [0], [0], [1], [0, 0, 1, 1], [], []>} : vector<2x256xbf16>, vector<256x128xbf16>, vector<2x128xf32> -> vector<2x128xf32>
      %c0_20 = arith.constant 0 : index
      %c0_21 = arith.constant 0 : index
      %22 = vector.load %arg8[%c0_20, %c0_21] : memref<1x128xf32, #tpu.memory_space<vmem>>, vector<1x128xf32>
      %23 = vector.broadcast %22 : vector<1x128xf32> to vector<2x128xf32>
      %24 = arith.addf %21, %23 : vector<2x128xf32>
      %cst_22 = arith.constant 0.000000e+00 : f32
      %25 = vector.broadcast %cst_22 : f32 to vector<2x128xf32>
      %26 = arith.maximumf %24, %25 : vector<2x128xf32>
      %27 = arith.truncf %18 : vector<2x128xf32> to vector<2x128xbf16>
      %c0_23 = arith.constant 0 : index
      %c0_24 = arith.constant 0 : index
      %28 = vector.load %arg9[%c0_23, %c0_24] : memref<128x128xbf16, #tpu.memory_space<vmem>>, vector<128x128xbf16>
      %cst_25 = arith.constant dense<0.000000e+00> : vector<2x128xf32>
      %29 = tpu.matmul %27, %28, %cst_25 {dimension_numbers = #tpu.dot_dimension_numbers<[1], [0], [0], [1], [0, 0, 1, 1], [], []>} : vector<2x128xbf16>, vector<128x128xbf16>, vector<2x128xf32> -> vector<2x128xf32>
      %30 = arith.truncf %26 : vector<2x128xf32> to vector<2x128xbf16>
      %c0_26 = arith.constant 0 : index
      %c0_27 = arith.constant 0 : index
      %31 = vector.load %arg10[%c0_26, %c0_27] : memref<128x128xbf16, #tpu.memory_space<vmem>>, vector<128x128xbf16>
      %cst_28 = arith.constant dense<0.000000e+00> : vector<2x128xf32>
      %32 = tpu.matmul %30, %31, %cst_28 {dimension_numbers = #tpu.dot_dimension_numbers<[1], [0], [0], [1], [0, 0, 1, 1], [], []>} : vector<2x128xbf16>, vector<128x128xbf16>, vector<2x128xf32> -> vector<2x128xf32>
      %33 = arith.addf %29, %32 : vector<2x128xf32>
      %c0_29 = arith.constant 0 : index
      %c0_30 = arith.constant 0 : index
      %34 = vector.load %arg4[%c0_29, %c0_30] : memref<2x128xbf16, #tpu.memory_space<vmem>>, vector<2x128xbf16>
      %c0_31 = arith.constant 0 : index
      %c0_32 = arith.constant 0 : index
      %35 = vector.load %arg11[%c0_31, %c0_32] : memref<128x128xbf16, #tpu.memory_space<vmem>>, vector<128x128xbf16>
      %cst_33 = arith.constant dense<0.000000e+00> : vector<2x128xf32>
      %36 = tpu.matmul %34, %35, %cst_33 {dimension_numbers = #tpu.dot_dimension_numbers<[1], [0], [0], [1], [0, 0, 1, 1], [], []>} : vector<2x128xbf16>, vector<128x128xbf16>, vector<2x128xf32> -> vector<2x128xf32>
      %37 = arith.addf %33, %36 : vector<2x128xf32>
      %c0_34 = arith.constant 0 : index
      %c0_35 = arith.constant 0 : index
      %38 = vector.load %arg12[%c0_34, %c0_35] : memref<1x128xf32, #tpu.memory_space<vmem>>, vector<1x128xf32>
      %39 = vector.broadcast %38 : vector<1x128xf32> to vector<2x128xf32>
      %40 = arith.addf %37, %39 : vector<2x128xf32>
      %cst_36 = arith.constant 0.000000e+00 : f32
      %41 = vector.broadcast %cst_36 : f32 to vector<2x128xf32>
      %42 = arith.maximumf %40, %41 : vector<2x128xf32>
      %43 = arith.truncf %42 : vector<2x128xf32> to vector<2x128xbf16>
      %c0_37 = arith.constant 0 : index
      %c0_38 = arith.constant 0 : index
      %44 = vector.load %arg13[%c0_37, %c0_38] : memref<128x128xbf16, #tpu.memory_space<vmem>>, vector<128x128xbf16>
      %cst_39 = arith.constant dense<0.000000e+00> : vector<2x128xf32>
      %45 = tpu.matmul %43, %44, %cst_39 {dimension_numbers = #tpu.dot_dimension_numbers<[1], [0], [0], [1], [0, 0, 1, 1], [], []>} : vector<2x128xbf16>, vector<128x128xbf16>, vector<2x128xf32> -> vector<2x128xf32>
      %c0_40 = arith.constant 0 : index
      %c0_41 = arith.constant 0 : index
      %46 = vector.load %arg14[%c0_40, %c0_41] : memref<1x128xf32, #tpu.memory_space<vmem>>, vector<1x128xf32>
      %47 = vector.broadcast %46 : vector<1x128xf32> to vector<2x128xf32>
      %48 = arith.addf %45, %47 : vector<2x128xf32>
      %c0_42 = arith.constant 0 : index
      %c0_43 = arith.constant 0 : index
      %49 = vector.load %arg15[%c0_42, %c0_43] : memref<2x128xf32, #tpu.memory_space<vmem>>, vector<2x128xf32>
      tpu.vector_store %arg15[%c0_42, %c0_43], %48 {strides = array<i32>} : memref<2x128xf32, #tpu.memory_space<vmem>>, vector<2x128xf32>,
    } else {
    }
    return
  }
  func.func @transform_0(%arg0: i32, %arg1: i32) -> (i32, i32) {
    %c0_i32 = arith.constant 0 : i32
    return %arg0, %arg1 : i32, i32
  }
  func.func @transform_1(%arg0: i32, %arg1: i32) -> (i32, i32) {
    %c0_i32 = arith.constant 0 : i32
    %c0_i32_0 = arith.constant 0 : i32
    return %arg0, %c0_i32 : i32, i32
  }
  func.func @transform_2(%arg0: i32, %arg1: i32) -> (i32, i32) {
    %c0_i32 = arith.constant 0 : i32
    %c0_i32_0 = arith.constant 0 : i32
    return %arg0, %c0_i32 : i32, i32
  }
  func.func @transform_3(%arg0: i32, %arg1: i32) -> (i32, i32) {
    %c0_i32 = arith.constant 0 : i32
    %c0_i32_0 = arith.constant 0 : i32
    return %arg1, %c0_i32 : i32, i32
  }
  func.func @transform_4(%arg0: i32, %arg1: i32) -> (i32, i32) {
    %c0_i32 = arith.constant 0 : i32
    %c0_i32_0 = arith.constant 0 : i32
    %c0_i32_1 = arith.constant 0 : i32
    return %c0_i32, %c0_i32_0 : i32, i32
  }
  func.func @transform_5(%arg0: i32, %arg1: i32) -> (i32, i32) {
    %c0_i32 = arith.constant 0 : i32
    %c0_i32_0 = arith.constant 0 : i32
    %c0_i32_1 = arith.constant 0 : i32
    return %c0_i32, %c0_i32_0 : i32, i32
  }
  func.func @transform_6(%arg0: i32, %arg1: i32) -> (i32, i32) {
    %c0_i32 = arith.constant 0 : i32
    %c0_i32_0 = arith.constant 0 : i32
    %c0_i32_1 = arith.constant 0 : i32
    return %c0_i32, %c0_i32_0 : i32, i32
  }
  func.func @transform_7(%arg0: i32, %arg1: i32) -> (i32, i32) {
    %c0_i32 = arith.constant 0 : i32
    %c0_i32_0 = arith.constant 0 : i32
    %c0_i32_1 = arith.constant 0 : i32
    return %c0_i32, %c0_i32_0 : i32, i32
  }
  func.func @transform_8(%arg0: i32, %arg1: i32) -> (i32, i32) {
    %c0_i32 = arith.constant 0 : i32
    %c0_i32_0 = arith.constant 0 : i32
    %c0_i32_1 = arith.constant 0 : i32
    return %c0_i32, %c0_i32_0 : i32, i32
  }
  func.func @transform_9(%arg0: i32, %arg1: i32) -> (i32, i32) {
    %c0_i32 = arith.constant 0 : i32
    %c0_i32_0 = arith.constant 0 : i32
    %c0_i32_1 = arith.constant 0 : i32
    return %c0_i32, %c0_i32_0 : i32, i32
  }
  func.func @transform_10(%arg0: i32, %arg1: i32) -> (i32, i32) {
    %c0_i32 = arith.constant 0 : i32
    %c0_i32_0 = arith.constant 0 : i32
    %c0_i32_1 = arith.constant 0 : i32
    return %c0_i32, %c0_i32_0 : i32, i32
  }
  func.func @transform_11(%arg0: i32, %arg1: i32) -> (i32, i32) {
    %c0_i32 = arith.constant 0 : i32
    %c0_i32_0 = arith.constant 0 : i32
    %c0_i32_1 = arith.constant 0 : i32
    return %c0_i32, %c0_i32_0 : i32, i32
  }
  func.func @transform_12(%arg0: i32, %arg1: i32) -> (i32, i32) {
    %c0_i32 = arith.constant 0 : i32
    %c0_i32_0 = arith.constant 0 : i32
    %c0_i32_1 = arith.constant 0 : i32
    return %c0_i32, %c0_i32_0 : i32, i32
  }
  func.func @transform_13(%arg0: i32, %arg1: i32) -> (i32, i32) {
    %c0_i32 = arith.constant 0 : i32
    %c0_i32_0 = arith.constant 0 : i32
    return %arg0, %c0_i32 : i32, i32
  }
}

</mosaic_0001>

<llo_original>
// kernel: _forward_impl.1
$region0: #{_forward_impl.1}
  #allocation0 [shape = 'u32[]', space=smem, size = 0x4, offset = 0x4, fixed_abs, tag = 'smem constant byte address 0x4 - core index']
  #allocation1 [shape = 'u32[72,128]{1,0:T(1,128)}', space=vmem, size = 0x9000, scoped, tag = 'internal scratch']
  #allocation2 [shape = 'f32[2,128]{1,0:T(2,128)}', space=vmem, size = 0x400, scoped, tag = 'scratch operand']
  %s0 = inlined_call_operand.vmem [shape: f32[2,1024], index: 0, kind: input, shape index: {}]
  %s1 = inlined_call_operand.vmem [shape: bf16[2,256], index: 1, kind: input, shape index: {}]
  %s2 = inlined_call_operand.vmem [shape: bf16[2,128], index: 2, kind: input, shape index: {}]
  %s3 = inlined_call_operand.vmem [shape: bf16[1024,128], index: 3, kind: input, shape index: {}]
  %s4 = inlined_call_operand.vmem [shape: f32[1,128], index: 4, kind: input, shape index: {}]
  %s5 = inlined_call_operand.vmem [shape: bf16[256,128], index: 5, kind: input, shape index: {}]
  %s6 = inlined_call_operand.vmem [shape: f32[1,128], index: 6, kind: input, shape index: {}]
  %s7 = inlined_call_operand.vmem [shape: bf16[128,128], index: 7, kind: input, shape index: {}]
  %s8 = inlined_call_operand.vmem [shape: bf16[128,128], index: 8, kind: input, shape index: {}]
  %s9 = inlined_call_operand.vmem [shape: bf16[128,128], index: 9, kind: input, shape index: {}]
  %s10 = inlined_call_operand.vmem [shape: f32[1,128], index: 10, kind: input, shape index: {}]
  %s11 = inlined_call_operand.vmem [shape: bf16[128,128], index: 11, kind: input, shape index: {}]
  %s12 = inlined_call_operand.vmem [shape: f32[1,128], index: 12, kind: input, shape index: {}]
  %s13 = inlined_call_operand.hbm [shape: f32[2,128], index: 13, kind: output, shape index: {}]
  %s14 = sld [smem:[#allocation0]]
  $region70: #{_forward_impl.1} parent=0
    _
  %s16 = ssub.s32 1, %s14
  %s17 = scalar_select 0, %s16, %s14
  $region1: #{_forward_impl.1} parent=0
    #allocation3 [shape = 'u8[1024]{0}', space=vmem, size = 0x400, scoped, tag = 'output window, operand 0, single buffered']
    #allocation4 [shape = 's32[1]{0}', space=sflag, size = 0x4, scoped, tag = 'scoped memory for _forward_impl.1']
    %18 = vsyncpa [#allocation4], 0
    // Predicated region
    $region2: #{_forward_impl.1} parent=1 // pred_check
      _
    $region3: #{_forward_impl.1} parent=1 // pred_check_branch
      %20 = sbr.rel (0) target = $region5
    $region4: #{_forward_impl.1} parent=1 // pred_region
      _
    $region5: #{_forward_impl.1} parent=1 // pred_fallthru
      _
    // Predicated region
    $region6: #{_forward_impl.1} parent=1 // pred_check
      _
    $region7: #{_forward_impl.1} parent=1 // pred_check_branch
      %22 = sbr.rel (0) target = $region9
    $region8: #{_forward_impl.1} parent=1 // pred_region
      _
    $region9: #{_forward_impl.1} parent=1 // pred_fallthru
      _
    // Predicated region
    $region10: #{_forward_impl.1} parent=1 // pred_check
      _
    $region11: #{_forward_impl.1} parent=1 // pred_check_branch
      %24 = sbr.rel (0) target = $region13
    $region12: #{_forward_impl.1} parent=1 // pred_region
      _
    $region13: #{_forward_impl.1} parent=1 // pred_fallthru
      _
    // Predicated region
    $region14: #{_forward_impl.1} parent=1 // pred_check
      _
    $region15: #{_forward_impl.1} parent=1 // pred_check_branch
      %26 = sbr.rel (0) target = $region17
    $region16: #{_forward_impl.1} parent=1 // pred_region
      _
    $region17: #{_forward_impl.1} parent=1 // pred_fallthru
      _
    // Predicated region
    $region18: #{_forward_impl.1} parent=1 // pred_check
      _
    $region19: #{_forward_impl.1} parent=1 // pred_check_branch
      %28 = sbr.rel (0) target = $region21
    $region20: #{_forward_impl.1} parent=1 // pred_region
      _
    $region21: #{_forward_impl.1} parent=1 // pred_fallthru
      _
    // Predicated region
    $region22: #{_forward_impl.1} parent=1 // pred_check
      _
    $region23: #{_forward_impl.1} parent=1 // pred_check_branch
      %30 = sbr.rel (0) target = $region25
    $region24: #{_forward_impl.1} parent=1 // pred_region
      _
    $region25: #{_forward_impl.1} parent=1 // pred_fallthru
      _
    // Predicated region
    $region26: #{_forward_impl.1} parent=1 // pred_check
      _
    $region27: #{_forward_impl.1} parent=1 // pred_check_branch
      %32 = sbr.rel (0) target = $region29
    $region28: #{_forward_impl.1} parent=1 // pred_region
      _
    $region29: #{_forward_impl.1} parent=1 // pred_fallthru
      _
    // Predicated region
    $region30: #{_forward_impl.1} parent=1 // pred_check
      _
    $region31: #{_forward_impl.1} parent=1 // pred_check_branch
      %34 = sbr.rel (0) target = $region33
    $region32: #{_forward_impl.1} parent=1 // pred_region
      _
    $region33: #{_forward_impl.1} parent=1 // pred_fallthru
      _
    // Predicated region
    $region34: #{_forward_impl.1} parent=1 // pred_check
      _
    $region35: #{_forward_impl.1} parent=1 // pred_check_branch
      %36 = sbr.rel (0) target = $region37
    $region36: #{_forward_impl.1} parent=1 // pred_region
      _
    $region37: #{_forward_impl.1} parent=1 // pred_fallthru
      _
    // Predicated region
    $region38: #{_forward_impl.1} parent=1 // pred_check
      _
    $region39: #{_forward_impl.1} parent=1 // pred_check_branch
      %38 = sbr.rel (0) target = $region41
    $region40: #{_forward_impl.1} parent=1 // pred_region
      _
    $region41: #{_forward_impl.1} parent=1 // pred_fallthru
      _
    // Predicated region
    $region42: #{_forward_impl.1} parent=1 // pred_check
      _
    $region43: #{_forward_impl.1} parent=1 // pred_check_branch
      %40 = sbr.rel (0) target = $region45
    $region44: #{_forward_impl.1} parent=1 // pred_region
      _
    $region45: #{_forward_impl.1} parent=1 // pred_fallthru
      _
    // Predicated region
    $region46: #{_forward_impl.1} parent=1 // pred_check
      _
    $region47: #{_forward_impl.1} parent=1 // pred_check_branch
      %42 = sbr.rel (0) target = $region49
    $region48: #{_forward_impl.1} parent=1 // pred_region
      _
    $region49: #{_forward_impl.1} parent=1 // pred_fallthru
      _
    // Predicated region
    $region50: #{_forward_impl.1} parent=1 // pred_check
      _
    $region51: #{_forward_impl.1} parent=1 // pred_check_branch
      %44 = sbr.rel (0) target = $region53
    $region52: #{_forward_impl.1} parent=1 // pred_region
      _
    $region53: #{_forward_impl.1} parent=1 // pred_fallthru
      _
    %p45 = scmp.eq.s32.totalorder 0, 0
    // Predicated region
    $region54: #{_forward_impl.1} parent=1 // pred_check
      %p46 = pneg %p45
    $region55: #{_forward_impl.1} parent=1 // pred_check_branch
      %48 = sbr.rel (%p46) target = $region57
    $region56: #{_forward_impl.1} parent=1 // pred_region
      %49 = vst [vmem:[#allocation2] sm:$0x3] 0.0
    $region57: #{_forward_impl.1} parent=1 // pred_fallthru
      _
    %v50 = vld [vmem:[#allocation2] sm:$0x3]
    %v51 = vld [vmem:[%s0] sm:$0xff]
    %v52 = vld [vmem:[%s0 + $0x8] sm:$0xff]
    %55 = vst [vmem:[#allocation1] ss:$4 sm:$0xff] %v51
    %s56 = scalar_lea.vmem [#allocation1], 32
    %57 = vst [vmem:[%s56] ss:$4 sm:$0xff] %v52
    %v58 = vld.sshfl [vmem:[#allocation1] sm:$0xff pattern:$0x73625140]
    %v59 = vld.sshfl [vmem:[#allocation1 + $0x8] sm:$0xff pattern:$0x73625140]
    %v60 = vld.sshfl [vmem:[#allocation1 + $0x10] sm:$0xff pattern:$0x73625140]
    %v61 = vld.sshfl [vmem:[#allocation1 + $0x18] sm:$0xff pattern:$0x73625140]
    %v62 = vld.sshfl [vmem:[#allocation1 + $0x20] sm:$0xff pattern:$0x73625140]
    %v63 = vld.sshfl [vmem:[#allocation1 + $0x28] sm:$0xff pattern:$0x73625140]
    %v64 = vld.sshfl [vmem:[#allocation1 + $0x30] sm:$0xff pattern:$0x73625140]
    %v65 = vld.sshfl [vmem:[#allocation1 + $0x38] sm:$0xff pattern:$0x73625140]
    %v74 = vpack.c.bf16 %v58, %v58
    %v75 = vpack.c.bf16 %v59, %v59
    %v76 = vpack.c.bf16 %v60, %v60
    %v77 = vpack.c.bf16 %v61, %v61
    %v78 = vpack.c.bf16 %v62, %v62
    %v79 = vpack.c.bf16 %v63, %v63
    %v80 = vpack.c.bf16 %v64, %v64
    %v81 = vpack.c.bf16 %v65, %v65
    %v82 = vld [vmem:[%s3] sm:$0xf]
    %v83 = vld [vmem:[%s3 + $0x4] sm:$0xf]
    %v84 = vld [vmem:[%s3 + $0x8] sm:$0xf]
    %v85 = vld [vmem:[%s3 + $0xc] sm:$0xf]
    %v86 = vld [vmem:[%s3 + $0x10] sm:$0xf]
    %v87 = vld [vmem:[%s3 + $0x14] sm:$0xf]
    %v88 = vld [vmem:[%s3 + $0x18] sm:$0xf]
    %v89 = vld [vmem:[%s3 + $0x1c] sm:$0xf]
    %v90 = vld [vmem:[%s3 + $0x20] sm:$0xf]
    %v91 = vld [vmem:[%s3 + $0x24] sm:$0xf]
    %v92 = vld [vmem:[%s3 + $0x28] sm:$0xf]
    %v93 = vld [vmem:[%s3 + $0x2c] sm:$0xf]
    %v94 = vld [vmem:[%s3 + $0x30] sm:$0xf]
    %v95 = vld [vmem:[%s3 + $0x34] sm:$0xf]
    %v96 = vld [vmem:[%s3 + $0x38] sm:$0xf]
    %v97 = vld [vmem:[%s3 + $0x3c] sm:$0xf]
    %v98 = vld [vmem:[%s3 + $0x40] sm:$0xf]
    %v99 = vld [vmem:[%s3 + $0x44] sm:$0xf]
    %v100 = vld [vmem:[%s3 + $0x48] sm:$0xf]
    %v101 = vld [vmem:[%s3 + $0x4c] sm:$0xf]
    %v102 = vld [vmem:[%s3 + $0x50] sm:$0xf]
    %v103 = vld [vmem:[%s3 + $0x54] sm:$0xf]
    %v104 = vld [vmem:[%s3 + $0x58] sm:$0xf]
    %v105 = vld [vmem:[%s3 + $0x5c] sm:$0xf]
    %v106 = vld [vmem:[%s3 + $0x60] sm:$0xf]
    %v107 = vld [vmem:[%s3 + $0x64] sm:$0xf]
    %v108 = vld [vmem:[%s3 + $0x68] sm:$0xf]
    %v109 = vld [vmem:[%s3 + $0x6c] sm:$0xf]
    %v110 = vld [vmem:[%s3 + $0x70] sm:$0xf]
    %v111 = vld [vmem:[%s3 + $0x74] sm:$0xf]
    %v112 = vld [vmem:[%s3 + $0x78] sm:$0xf]
    %v113 = vld [vmem:[%s3 + $0x7c] sm:$0xf]
    %v114 = vld [vmem:[%s3 + $0x80] sm:$0xf]
    %v115 = vld [vmem:[%s3 + $0x84] sm:$0xf]
    %v116 = vld [vmem:[%s3 + $0x88] sm:$0xf]
    %v117 = vld [vmem:[%s3 + $0x8c] sm:$0xf]
    %v118 = vld [vmem:[%s3 + $0x90] sm:$0xf]
    %v119 = vld [vmem:[%s3 + $0x94] sm:$0xf]
    %v120 = vld [vmem:[%s3 + $0x98] sm:$0xf]
    %v121 = vld [vmem:[%s3 + $0x9c] sm:$0xf]
    %v122 = vld [vmem:[%s3 + $0xa0] sm:$0xf]
    %v123 = vld [vmem:[%s3 + $0xa4] sm:$0xf]
    %v124 = vld [vmem:[%s3 + $0xa8] sm:$0xf]
    %v125 = vld [vmem:[%s3 + $0xac] sm:$0xf]
    %v126 = vld [vmem:[%s3 + $0xb0] sm:$0xf]
    %v127 = vld [vmem:[%s3 + $0xb4] sm:$0xf]
    %v128 = vld [vmem:[%s3 + $0xb8] sm:$0xf]
    %v129 = vld [vmem:[%s3 + $0xbc] sm:$0xf]
    %v130 = vld [vmem:[%s3 + $0xc0] sm:$0xf]
    %v131 = vld [vmem:[%s3 + $0xc4] sm:$0xf]
    %v132 = vld [vmem:[%s3 + $0xc8] sm:$0xf]
    %v133 = vld [vmem:[%s3 + $0xcc] sm:$0xf]
    %v134 = vld [vmem:[%s3 + $0xd0] sm:$0xf]
    %v135 = vld [vmem:[%s3 + $0xd4] sm:$0xf]
    %v136 = vld [vmem:[%s3 + $0xd8] sm:$0xf]
    %v137 = vld [vmem:[%s3 + $0xdc] sm:$0xf]
    %v138 = vld [vmem:[%s3 + $0xe0] sm:$0xf]
    %v139 = vld [vmem:[%s3 + $0xe4] sm:$0xf]
    %v140 = vld [vmem:[%s3 + $0xe8] sm:$0xf]
    %v141 = vld [vmem:[%s3 + $0xec] sm:$0xf]
    %v142 = vld [vmem:[%s3 + $0xf0] sm:$0xf]
    %v143 = vld [vmem:[%s3 + $0xf4] sm:$0xf]
    %v144 = vld [vmem:[%s3 + $0xf8] sm:$0xf]
    %v145 = vld [vmem:[%s3 + $0xfc] sm:$0xf]
    %v146 = vld [vmem:[%s3 + $0x100] sm:$0xf]
    %v147 = vld [vmem:[%s3 + $0x104] sm:$0xf]
    %v148 = vld [vmem:[%s3 + $0x108] sm:$0xf]
    %v149 = vld [vmem:[%s3 + $0x10c] sm:$0xf]
    %v150 = vld [vmem:[%s3 + $0x110] sm:$0xf]
    %v151 = vld [vmem:[%s3 + $0x114] sm:$0xf]
    %v152 = vld [vmem:[%s3 + $0x118] sm:$0xf]
    %v153 = vld [vmem:[%s3 + $0x11c] sm:$0xf]
    %v154 = vld [vmem:[%s3 + $0x120] sm:$0xf]
    %v155 = vld [vmem:[%s3 + $0x124] sm:$0xf]
    %v156 = vld [vmem:[%s3 + $0x128] sm:$0xf]
    %v157 = vld [vmem:[%s3 + $0x12c] sm:$0xf]
    %v158 = vld [vmem:[%s3 + $0x130] sm:$0xf]
    %v159 = vld [vmem:[%s3 + $0x134] sm:$0xf]
    %v160 = vld [vmem:[%s3 + $0x138] sm:$0xf]
    %v161 = vld [vmem:[%s3 + $0x13c] sm:$0xf]
    %v162 = vld [vmem:[%s3 + $0x140] sm:$0xf]
    %v163 = vld [vmem:[%s3 + $0x144] sm:$0xf]
    %v164 = vld [vmem:[%s3 + $0x148] sm:$0xf]
    %v165 = vld [vmem:[%s3 + $0x14c] sm:$0xf]
    %v166 = vld [vmem:[%s3 + $0x150] sm:$0xf]
    %v167 = vld [vmem:[%s3 + $0x154] sm:$0xf]
    %v168 = vld [vmem:[%s3 + $0x158] sm:$0xf]
    %v169 = vld [vmem:[%s3 + $0x15c] sm:$0xf]
    %v170 = vld [vmem:[%s3 + $0x160] sm:$0xf]
    %v171 = vld [vmem:[%s3 + $0x164] sm:$0xf]
    %v172 = vld [vmem:[%s3 + $0x168] sm:$0xf]
    %v173 = vld [vmem:[%s3 + $0x16c] sm:$0xf]
    %v174 = vld [vmem:[%s3 + $0x170] sm:$0xf]
    %v175 = vld [vmem:[%s3 + $0x174] sm:$0xf]
    %v176 = vld [vmem:[%s3 + $0x178] sm:$0xf]
    %v177 = vld [vmem:[%s3 + $0x17c] sm:$0xf]
    %v178 = vld [vmem:[%s3 + $0x180] sm:$0xf]
    %v179 = vld [vmem:[%s3 + $0x184] sm:$0xf]
    %v180 = vld [vmem:[%s3 + $0x188] sm:$0xf]
    %v181 = vld [vmem:[%s3 + $0x18c] sm:$0xf]
    %v182 = vld [vmem:[%s3 + $0x190] sm:$0xf]
    %v183 = vld [vmem:[%s3 + $0x194] sm:$0xf]
    %v184 = vld [vmem:[%s3 + $0x198] sm:$0xf]
    %v185 = vld [vmem:[%s3 + $0x19c] sm:$0xf]
    %v186 = vld [vmem:[%s3 + $0x1a0] sm:$0xf]
    %v187 = vld [vmem:[%s3 + $0x1a4] sm:$0xf]
    %v188 = vld [vmem:[%s3 + $0x1a8] sm:$0xf]
    %v189 = vld [vmem:[%s3 + $0x1ac] sm:$0xf]
    %v190 = vld [vmem:[%s3 + $0x1b0] sm:$0xf]
    %v191 = vld [vmem:[%s3 + $0x1b4] sm:$0xf]
    %v192 = vld [vmem:[%s3 + $0x1b8] sm:$0xf]
    %v193 = vld [vmem:[%s3 + $0x1bc] sm:$0xf]
    %v194 = vld [vmem:[%s3 + $0x1c0] sm:$0xf]
    %v195 = vld [vmem:[%s3 + $0x1c4] sm:$0xf]
    %v196 = vld [vmem:[%s3 + $0x1c8] sm:$0xf]
    %v197 = vld [vmem:[%s3 + $0x1cc] sm:$0xf]
    %v198 = vld [vmem:[%s3 + $0x1d0] sm:$0xf]
    %v199 = vld [vmem:[%s3 + $0x1d4] sm:$0xf]
    %v200 = vld [vmem:[%s3 + $0x1d8] sm:$0xf]
    %v201 = vld [vmem:[%s3 + $0x1dc] sm:$0xf]
    %v202 = vld [vmem:[%s3 + $0x1e0] sm:$0xf]
    %v203 = vld [vmem:[%s3 + $0x1e4] sm:$0xf]
    %v204 = vld [vmem:[%s3 + $0x1e8] sm:$0xf]
    %v205 = vld [vmem:[%s3 + $0x1ec] sm:$0xf]
    %v206 = vld [vmem:[%s3 + $0x1f0] sm:$0xf]
    %v207 = vld [vmem:[%s3 + $0x1f4] sm:$0xf]
    %v208 = vld [vmem:[%s3 + $0x1f8] sm:$0xf]
    %v209 = vld [vmem:[%s3 + $0x1fc] sm:$0xf]
    %v338 = vunpack.c.l.b16 %v82
    %v339 = vunpack.c.l.b16 %v83
    %v340 = vunpack.c.l.b16 %v84
    %v341 = vunpack.c.l.b16 %v85
    %v342 = vunpack.c.l.b16 %v86
    %v343 = vunpack.c.l.b16 %v87
    %v344 = vunpack.c.l.b16 %v88
    %v345 = vunpack.c.l.b16 %v89
    %v346 = vunpack.c.l.b16 %v90
    %v347 = vunpack.c.l.b16 %v91
    %v348 = vunpack.c.l.b16 %v92
    %v349 = vunpack.c.l.b16 %v93
    %v350 = vunpack.c.l.b16 %v94
    %v351 = vunpack.c.l.b16 %v95
    %v352 = vunpack.c.l.b16 %v96
    %v353 = vunpack.c.l.b16 %v97
    %v354 = vunpack.c.l.b16 %v98
    %v355 = vunpack.c.l.b16 %v99
    %v356 = vunpack.c.l.b16 %v100
    %v357 = vunpack.c.l.b16 %v101
    %v358 = vunpack.c.l.b16 %v102
    %v359 = vunpack.c.l.b16 %v103
    %v360 = vunpack.c.l.b16 %v104
    %v361 = vunpack.c.l.b16 %v105
    %v362 = vunpack.c.l.b16 %v106
    %v363 = vunpack.c.l.b16 %v107
    %v364 = vunpack.c.l.b16 %v108
    %v365 = vunpack.c.l.b16 %v109
    %v366 = vunpack.c.l.b16 %v110
    %v367 = vunpack.c.l.b16 %v111
    %v368 = vunpack.c.l.b16 %v112
    %v369 = vunpack.c.l.b16 %v113
    %v370 = vunpack.c.l.b16 %v114
    %v371 = vunpack.c.l.b16 %v115
    %v372 = vunpack.c.l.b16 %v116
    %v373 = vunpack.c.l.b16 %v117
    %v374 = vunpack.c.l.b16 %v118
    %v375 = vunpack.c.l.b16 %v119
    %v376 = vunpack.c.l.b16 %v120
    %v377 = vunpack.c.l.b16 %v121
    %v378 = vunpack.c.l.b16 %v122
    %v379 = vunpack.c.l.b16 %v123
    %v380 = vunpack.c.l.b16 %v124
    %v381 = vunpack.c.l.b16 %v125
    %v382 = vunpack.c.l.b16 %v126
    %v383 = vunpack.c.l.b16 %v127
    %v384 = vunpack.c.l.b16 %v128
    %v385 = vunpack.c.l.b16 %v129
    %v386 = vunpack.c.l.b16 %v130
    %v387 = vunpack.c.l.b16 %v131
    %v388 = vunpack.c.l.b16 %v132
    %v389 = vunpack.c.l.b16 %v133
    %v390 = vunpack.c.l.b16 %v134
    %v391 = vunpack.c.l.b16 %v135
    %v392 = vunpack.c.l.b16 %v136
    %v393 = vunpack.c.l.b16 %v137
    %v394 = vunpack.c.l.b16 %v138
    %v395 = vunpack.c.l.b16 %v139
    %v396 = vunpack.c.l.b16 %v140
    %v397 = vunpack.c.l.b16 %v141
    %v398 = vunpack.c.l.b16 %v142
    %v399 = vunpack.c.l.b16 %v143
    %v400 = vunpack.c.l.b16 %v144
    %v401 = vunpack.c.l.b16 %v145
    %v402 = vunpack.c.l.b16 %v146
    %v403 = vunpack.c.l.b16 %v147
    %v404 = vunpack.c.l.b16 %v148
    %v405 = vunpack.c.l.b16 %v149
    %v406 = vunpack.c.l.b16 %v150
    %v407 = vunpack.c.l.b16 %v151
    %v408 = vunpack.c.l.b16 %v152
    %v409 = vunpack.c.l.b16 %v153
    %v410 = vunpack.c.l.b16 %v154
    %v411 = vunpack.c.l.b16 %v155
    %v412 = vunpack.c.l.b16 %v156
    %v413 = vunpack.c.l.b16 %v157
    %v414 = vunpack.c.l.b16 %v158
    %v415 = vunpack.c.l.b16 %v159
    %v416 = vunpack.c.l.b16 %v160
    %v417 = vunpack.c.l.b16 %v161
    %v418 = vunpack.c.l.b16 %v162
    %v419 = vunpack.c.l.b16 %v163
    %v420 = vunpack.c.l.b16 %v164
    %v421 = vunpack.c.l.b16 %v165
    %v422 = vunpack.c.l.b16 %v166
    %v423 = vunpack.c.l.b16 %v167
    %v424 = vunpack.c.l.b16 %v168
    %v425 = vunpack.c.l.b16 %v169
    %v426 = vunpack.c.l.b16 %v170
    %v427 = vunpack.c.l.b16 %v171
    %v428 = vunpack.c.l.b16 %v172
    %v429 = vunpack.c.l.b16 %v173
    %v430 = vunpack.c.l.b16 %v174
    %v431 = vunpack.c.l.b16 %v175
    %v432 = vunpack.c.l.b16 %v176
    %v433 = vunpack.c.l.b16 %v177
    %v434 = vunpack.c.l.b16 %v178
    %v435 = vunpack.c.l.b16 %v179
    %v436 = vunpack.c.l.b16 %v180
    %v437 = vunpack.c.l.b16 %v181
    %v438 = vunpack.c.l.b16 %v182
    %v439 = vunpack.c.l.b16 %v183
    %v440 = vunpack.c.l.b16 %v184
    %v441 = vunpack.c.l.b16 %v185
    %v442 = vunpack.c.l.b16 %v186
    %v443 = vunpack.c.l.b16 %v187
    %v444 = vunpack.c.l.b16 %v188
    %v445 = vunpack.c.l.b16 %v189
    %v446 = vunpack.c.l.b16 %v190
    %v447 = vunpack.c.l.b16 %v191
    %v448 = vunpack.c.l.b16 %v192
    %v449 = vunpack.c.l.b16 %v193
    %v450 = vunpack.c.l.b16 %v194
    %v451 = vunpack.c.l.b16 %v195
    %v452 = vunpack.c.l.b16 %v196
    %v453 = vunpack.c.l.b16 %v197
    %v454 = vunpack.c.l.b16 %v198
    %v455 = vunpack.c.l.b16 %v199
    %v456 = vunpack.c.l.b16 %v200
    %v457 = vunpack.c.l.b16 %v201
    %v458 = vunpack.c.l.b16 %v202
    %v459 = vunpack.c.l.b16 %v203
    %v460 = vunpack.c.l.b16 %v204
    %v461 = vunpack.c.l.b16 %v205
    %v462 = vunpack.c.l.b16 %v206
    %v463 = vunpack.c.l.b16 %v207
    %v464 = vunpack.c.l.b16 %v208
    %v465 = vunpack.c.l.b16 %v209
    %v466 = vpack.c.b16 %v339, %v338
    %v467 = vpack.c.b16 %v341, %v340
    %v468 = vpack.c.b16 %v343, %v342
    %v469 = vpack.c.b16 %v345, %v344
    %v470 = vpack.c.b16 %v347, %v346
    %v471 = vpack.c.b16 %v349, %v348
    %v472 = vpack.c.b16 %v351, %v350
    %v473 = vpack.c.b16 %v353, %v352
    %v474 = vpack.c.b16 %v355, %v354
    %v475 = vpack.c.b16 %v357, %v356
    %v476 = vpack.c.b16 %v359, %v358
    %v477 = vpack.c.b16 %v361, %v360
    %v478 = vpack.c.b16 %v363, %v362
    %v479 = vpack.c.b16 %v365, %v364
    %v480 = vpack.c.b16 %v367, %v366
    %v481 = vpack.c.b16 %v369, %v368
    %v482 = vpack.c.b16 %v371, %v370
    %v483 = vpack.c.b16 %v373, %v372
    %v484 = vpack.c.b16 %v375, %v374
    %v485 = vpack.c.b16 %v377, %v376
    %v486 = vpack.c.b16 %v379, %v378
    %v487 = vpack.c.b16 %v381, %v380
    %v488 = vpack.c.b16 %v383, %v382
    %v489 = vpack.c.b16 %v385, %v384
    %v490 = vpack.c.b16 %v387, %v386
    %v491 = vpack.c.b16 %v389, %v388
    %v492 = vpack.c.b16 %v391, %v390
    %v493 = vpack.c.b16 %v393, %v392
    %v494 = vpack.c.b16 %v395, %v394
    %v495 = vpack.c.b16 %v397, %v396
    %v496 = vpack.c.b16 %v399, %v398
    %v497 = vpack.c.b16 %v401, %v400
    %v498 = vpack.c.b16 %v403, %v402
    %v499 = vpack.c.b16 %v405, %v404
    %v500 = vpack.c.b16 %v407, %v406
    %v501 = vpack.c.b16 %v409, %v408
    %v502 = vpack.c.b16 %v411, %v410
    %v503 = vpack.c.b16 %v413, %v412
    %v504 = vpack.c.b16 %v415, %v414
    %v505 = vpack.c.b16 %v417, %v416
    %v506 = vpack.c.b16 %v419, %v418
    %v507 = vpack.c.b16 %v421, %v420
    %v508 = vpack.c.b16 %v423, %v422
    %v509 = vpack.c.b16 %v425, %v424
    %v510 = vpack.c.b16 %v427, %v426
    %v511 = vpack.c.b16 %v429, %v428
    %v512 = vpack.c.b16 %v431, %v430
    %v513 = vpack.c.b16 %v433, %v432
    %v514 = vpack.c.b16 %v435, %v434
    %v515 = vpack.c.b16 %v437, %v436
    %v516 = vpack.c.b16 %v439, %v438
    %v517 = vpack.c.b16 %v441, %v440
    %v518 = vpack.c.b16 %v443, %v442
    %v519 = vpack.c.b16 %v445, %v444
    %v520 = vpack.c.b16 %v447, %v446
    %v521 = vpack.c.b16 %v449, %v448
    %v522 = vpack.c.b16 %v451, %v450
    %v523 = vpack.c.b16 %v453, %v452
    %v524 = vpack.c.b16 %v455, %v454
    %v525 = vpack.c.b16 %v457, %v456
    %v526 = vpack.c.b16 %v459, %v458
    %v527 = vpack.c.b16 %v461, %v460
    %v528 = vpack.c.b16 %v463, %v462
    %v529 = vpack.c.b16 %v465, %v464
    %594 = vmatpush.bf16.msra.mxu0 %v473
    %595 = vmatpush.bf16.msra.mxu0 %v472
    %596 = vmatpush.bf16.msra.mxu0 %v471
    %597 = vmatpush.bf16.msra.mxu0 %v470
    %598 = vmatpush.bf16.msra.mxu0 %v469
    %599 = vmatpush.bf16.msra.mxu0 %v468
    %600 = vmatpush.bf16.msra.mxu0 %v467
    %601 = vmatpush.bf16.msra.mxu0 %v466
    %602 = vmatmul.bf16.gmra.mxu0 %v74
    %v603 = vpop.f32.mrf.mxu0
    %v604 = vadd.f32 0.0, %v603
    %v605 = vpop.f32.mrf.mxu0
    %606 = vdwg.mxu0
    %607 = vmatpush.bf16.msra.mxu0 %v481
    %608 = vmatpush.bf16.msra.mxu0 %v480
    %609 = vmatpush.bf16.msra.mxu0 %v479
    %610 = vmatpush.bf16.msra.mxu0 %v478
    %611 = vmatpush.bf16.msra.mxu0 %v477
    %612 = vmatpush.bf16.msra.mxu0 %v476
    %613 = vmatpush.bf16.msra.mxu0 %v475
    %614 = vmatpush.bf16.msra.mxu0 %v474
    %615 = vmatmul.bf16.gmra.mxu0 %v75
    %v616 = vpop.f32.mrf.mxu0
    %v617 = vadd.f32 %v604, %v616
    %v618 = vpop.f32.mrf.mxu0
    %619 = vdwg.mxu0
    %620 = vmatpush.bf16.msra.mxu0 %v489
    %621 = vmatpush.bf16.msra.mxu0 %v488
    %622 = vmatpush.bf16.msra.mxu0 %v487
    %623 = vmatpush.bf16.msra.mxu0 %v486
    %624 = vmatpush.bf16.msra.mxu0 %v485
    %625 = vmatpush.bf16.msra.mxu0 %v484
    %626 = vmatpush.bf16.msra.mxu0 %v483
    %627 = vmatpush.bf16.msra.mxu0 %v482
    %628 = vmatmul.bf16.gmra.mxu0 %v76
    %v629 = vpop.f32.mrf.mxu0
    %v630 = vadd.f32 %v617, %v629
    %v631 = vpop.f32.mrf.mxu0
    %632 = vdwg.mxu0
    %633 = vmatpush.bf16.msra.mxu0 %v497
    %634 = vmatpush.bf16.msra.mxu0 %v496
    %635 = vmatpush.bf16.msra.mxu0 %v495
    %636 = vmatpush.bf16.msra.mxu0 %v494
    %637 = vmatpush.bf16.msra.mxu0 %v493
    %638 = vmatpush.bf16.msra.mxu0 %v492
    %639 = vmatpush.bf16.msra.mxu0 %v491
    %640 = vmatpush.bf16.msra.mxu0 %v490
    %641 = vmatmul.bf16.gmra.mxu0 %v77
    %v642 = vpop.f32.mrf.mxu0
    %v643 = vadd.f32 %v630, %v642
    %v644 = vpop.f32.mrf.mxu0
    %645 = vdwg.mxu0
    %646 = vmatpush.bf16.msra.mxu0 %v505
    %647 = vmatpush.bf16.msra.mxu0 %v504
    %648 = vmatpush.bf16.msra.mxu0 %v503
    %649 = vmatpush.bf16.msra.mxu0 %v502
    %650 = vmatpush.bf16.msra.mxu0 %v501
    %651 = vmatpush.bf16.msra.mxu0 %v500
    %652 = vmatpush.bf16.msra.mxu0 %v499
    %653 = vmatpush.bf16.msra.mxu0 %v498
    %654 = vmatmul.bf16.gmra.mxu0 %v78
    %v655 = vpop.f32.mrf.mxu0
    %v656 = vadd.f32 %v643, %v655
    %v657 = vpop.f32.mrf.mxu0
    %658 = vdwg.mxu0
    %659 = vmatpush.bf16.msra.mxu0 %v513
    %660 = vmatpush.bf16.msra.mxu0 %v512
    %661 = vmatpush.bf16.msra.mxu0 %v511
    %662 = vmatpush.bf16.msra.mxu0 %v510
    %663 = vmatpush.bf16.msra.mxu0 %v509
    %664 = vmatpush.bf16.msra.mxu0 %v508
    %665 = vmatpush.bf16.msra.mxu0 %v507
    %666 = vmatpush.bf16.msra.mxu0 %v506
    %667 = vmatmul.bf16.gmra.mxu0 %v79
    %v668 = vpop.f32.mrf.mxu0
    %v669 = vadd.f32 %v656, %v668
    %v670 = vpop.f32.mrf.mxu0
    %671 = vdwg.mxu0
    %672 = vmatpush.bf16.msra.mxu0 %v521
    %673 = vmatpush.bf16.msra.mxu0 %v520
    %674 = vmatpush.bf16.msra.mxu0 %v519
    %675 = vmatpush.bf16.msra.mxu0 %v518
    %676 = vmatpush.bf16.msra.mxu0 %v517
    %677 = vmatpush.bf16.msra.mxu0 %v516
    %678 = vmatpush.bf16.msra.mxu0 %v515
    %679 = vmatpush.bf16.msra.mxu0 %v514
    %680 = vmatmul.bf16.gmra.mxu0 %v80
    %v681 = vpop.f32.mrf.mxu0
    %v682 = vadd.f32 %v669, %v681
    %v683 = vpop.f32.mrf.mxu0
    %684 = vdwg.mxu0
    %685 = vmatpush.bf16.msra.mxu0 %v529
    %686 = vmatpush.bf16.msra.mxu0 %v528
    %687 = vmatpush.bf16.msra.mxu0 %v527
    %688 = vmatpush.bf16.msra.mxu0 %v526
    %689 = vmatpush.bf16.msra.mxu0 %v525
    %690 = vmatpush.bf16.msra.mxu0 %v524
    %691 = vmatpush.bf16.msra.mxu0 %v523
    %692 = vmatpush.bf16.msra.mxu0 %v522
    %693 = vmatmul.bf16.gmra.mxu0 %v81
    %v694 = vpop.f32.mrf.mxu0
    %v695 = vadd.f32 %v682, %v694
    %v696 = vpop.f32.mrf.mxu0
    %697 = vdwg.mxu0
    %v698 = vadd.f32 %v50, %v695
    %699 = vst [vmem:[#allocation2] sm:$0x3] %v698
    // Predicated region
    $region58: #{_forward_impl.1} parent=1 // pred_check
      %p700 = pneg %p45
    $region59: #{_forward_impl.1} parent=1 // pred_check_branch
      %702 = sbr.rel (%p700) target = $region61
    $region60: #{_forward_impl.1} parent=1 // pred_region
      %v703 = vld [vmem:[#allocation2] sm:$0x3]
      %v704 = vld [vmem:[%s4] sm:$0x1]
      %v706 = vperm.slane %v704, 0
      %v708 = vadd.f32 %v703, %v706
      %v709 = vmax.f32 %v708, 0.0
      %v710 = vld [vmem:[%s1] sm:$0x3]
      %v711 = vld [vmem:[%s5] sm:$0xf]
      %v712 = vld [vmem:[%s5 + $0x4] sm:$0xf]
      %v713 = vld [vmem:[%s5 + $0x8] sm:$0xf]
      %v714 = vld [vmem:[%s5 + $0xc] sm:$0xf]
      %v715 = vld [vmem:[%s5 + $0x10] sm:$0xf]
      %v716 = vld [vmem:[%s5 + $0x14] sm:$0xf]
      %v717 = vld [vmem:[%s5 + $0x18] sm:$0xf]
      %v718 = vld [vmem:[%s5 + $0x1c] sm:$0xf]
      %v719 = vld [vmem:[%s5 + $0x20] sm:$0xf]
      %v720 = vld [vmem:[%s5 + $0x24] sm:$0xf]
      %v721 = vld [vmem:[%s5 + $0x28] sm:$0xf]
      %v722 = vld [vmem:[%s5 + $0x2c] sm:$0xf]
      %v723 = vld [vmem:[%s5 + $0x30] sm:$0xf]
      %v724 = vld [vmem:[%s5 + $0x34] sm:$0xf]
      %v725 = vld [vmem:[%s5 + $0x38] sm:$0xf]
      %v726 = vld [vmem:[%s5 + $0x3c] sm:$0xf]
      %v727 = vld [vmem:[%s5 + $0x40] sm:$0xf]
      %v728 = vld [vmem:[%s5 + $0x44] sm:$0xf]
      %v729 = vld [vmem:[%s5 + $0x48] sm:$0xf]
      %v730 = vld [vmem:[%s5 + $0x4c] sm:$0xf]
      %v731 = vld [vmem:[%s5 + $0x50] sm:$0xf]
      %v732 = vld [vmem:[%s5 + $0x54] sm:$0xf]
      %v733 = vld [vmem:[%s5 + $0x58] sm:$0xf]
      %v734 = vld [vmem:[%s5 + $0x5c] sm:$0xf]
      %v735 = vld [vmem:[%s5 + $0x60] sm:$0xf]
      %v736 = vld [vmem:[%s5 + $0x64] sm:$0xf]
      %v737 = vld [vmem:[%s5 + $0x68] sm:$0xf]
      %v738 = vld [vmem:[%s5 + $0x6c] sm:$0xf]
      %v739 = vld [vmem:[%s5 + $0x70] sm:$0xf]
      %v740 = vld [vmem:[%s5 + $0x74] sm:$0xf]
      %v741 = vld [vmem:[%s5 + $0x78] sm:$0xf]
      %v742 = vld [vmem:[%s5 + $0x7c] sm:$0xf]
      %v743 = vld [vmem:[%s6] sm:$0x1]
      %v745 = vperm.slane %v743, 0
      %748 = vst [vmem:[#allocation1] ss:$9 sm:$0xff] %v710
      %v749 = vld [vmem:[#allocation1] sm:$0xff]
      %v750 = vld [vmem:[#allocation1 + $0x9] sm:$0xff]
      %v785 = vunpack.c.l.b16 %v711
      %v786 = vunpack.c.l.b16 %v712
      %v787 = vunpack.c.l.b16 %v713
      %v788 = vunpack.c.l.b16 %v714
      %v789 = vunpack.c.l.b16 %v715
      %v790 = vunpack.c.l.b16 %v716
      %v791 = vunpack.c.l.b16 %v717
      %v792 = vunpack.c.l.b16 %v718
      %v793 = vunpack.c.l.b16 %v719
      %v794 = vunpack.c.l.b16 %v720
      %v795 = vunpack.c.l.b16 %v721
      %v796 = vunpack.c.l.b16 %v722
      %v797 = vunpack.c.l.b16 %v723
      %v798 = vunpack.c.l.b16 %v724
      %v799 = vunpack.c.l.b16 %v725
      %v800 = vunpack.c.l.b16 %v726
      %v801 = vunpack.c.l.b16 %v727
      %v802 = vunpack.c.l.b16 %v728
      %v803 = vunpack.c.l.b16 %v729
      %v804 = vunpack.c.l.b16 %v730
      %v805 = vunpack.c.l.b16 %v731
      %v806 = vunpack.c.l.b16 %v732
      %v807 = vunpack.c.l.b16 %v733
      %v808 = vunpack.c.l.b16 %v734
      %v809 = vunpack.c.l.b16 %v735
      %v810 = vunpack.c.l.b16 %v736
      %v811 = vunpack.c.l.b16 %v737
      %v812 = vunpack.c.l.b16 %v738
      %v813 = vunpack.c.l.b16 %v739
      %v814 = vunpack.c.l.b16 %v740
      %v815 = vunpack.c.l.b16 %v741
      %v816 = vunpack.c.l.b16 %v742
      %v817 = vpack.c.b16 %v786, %v785
      %v818 = vpack.c.b16 %v788, %v787
      %v819 = vpack.c.b16 %v790, %v789
      %v820 = vpack.c.b16 %v792, %v791
      %v821 = vpack.c.b16 %v794, %v793
      %v822 = vpack.c.b16 %v796, %v795
      %v823 = vpack.c.b16 %v798, %v797
      %v824 = vpack.c.b16 %v800, %v799
      %v825 = vpack.c.b16 %v802, %v801
      %v826 = vpack.c.b16 %v804, %v803
      %v827 = vpack.c.b16 %v806, %v805
      %v828 = vpack.c.b16 %v808, %v807
      %v829 = vpack.c.b16 %v810, %v809
      %v830 = vpack.c.b16 %v812, %v811
      %v831 = vpack.c.b16 %v814, %v813
      %v832 = vpack.c.b16 %v816, %v815
      %849 = vmatpush.bf16.msra.mxu0 %v824
      %850 = vmatpush.bf16.msra.mxu0 %v823
      %851 = vmatpush.bf16.msra.mxu0 %v822
      %852 = vmatpush.bf16.msra.mxu0 %v821
      %853 = vmatpush.bf16.msra.mxu0 %v820
      %854 = vmatpush.bf16.msra.mxu0 %v819
      %855 = vmatpush.bf16.msra.mxu0 %v818
      %856 = vmatpush.bf16.msra.mxu0 %v817
      %857 = vmatmul.bf16.gmra.mxu0 %v749
      %v858 = vpop.f32.mrf.mxu0
      %v859 = vadd.f32 %v745, %v858
      %v860 = vpop.f32.mrf.mxu0
      %861 = vdwg.mxu0
      %862 = vmatpush.bf16.msra.mxu0 %v832
      %863 = vmatpush.bf16.msra.mxu0 %v831
      %864 = vmatpush.bf16.msra.mxu0 %v830
      %865 = vmatpush.bf16.msra.mxu0 %v829
      %866 = vmatpush.bf16.msra.mxu0 %v828
      %867 = vmatpush.bf16.msra.mxu0 %v827
      %868 = vmatpush.bf16.msra.mxu0 %v826
      %869 = vmatpush.bf16.msra.mxu0 %v825
      %870 = vmatmul.bf16.gmra.mxu0 %v750
      %v871 = vpop.f32.mrf.mxu0
      %v872 = vadd.f32 %v859, %v871
      %v873 = vpop.f32.mrf.mxu0
      %874 = vdwg.mxu0
      %v875 = vmax.f32 %v872, 0.0
      %v876 = vpack.c.bf16 %v709, %v709
      %v877 = vld [vmem:[%s7] sm:$0xf]
      %v878 = vld [vmem:[%s7 + $0x4] sm:$0xf]
      %v879 = vld [vmem:[%s7 + $0x8] sm:$0xf]
      %v880 = vld [vmem:[%s7 + $0xc] sm:$0xf]
      %v881 = vld [vmem:[%s7 + $0x10] sm:$0xf]
      %v882 = vld [vmem:[%s7 + $0x14] sm:$0xf]
      %v883 = vld [vmem:[%s7 + $0x18] sm:$0xf]
      %v884 = vld [vmem:[%s7 + $0x1c] sm:$0xf]
      %v885 = vld [vmem:[%s7 + $0x20] sm:$0xf]
      %v886 = vld [vmem:[%s7 + $0x24] sm:$0xf]
      %v887 = vld [vmem:[%s7 + $0x28] sm:$0xf]
      %v888 = vld [vmem:[%s7 + $0x2c] sm:$0xf]
      %v889 = vld [vmem:[%s7 + $0x30] sm:$0xf]
      %v890 = vld [vmem:[%s7 + $0x34] sm:$0xf]
      %v891 = vld [vmem:[%s7 + $0x38] sm:$0xf]
      %v892 = vld [vmem:[%s7 + $0x3c] sm:$0xf]
      %v893 = vpack.c.bf16 %v875, %v875
      %v894 = vld [vmem:[%s8] sm:$0xf]
      %v895 = vld [vmem:[%s8 + $0x4] sm:$0xf]
      %v896 = vld [vmem:[%s8 + $0x8] sm:$0xf]
      %v897 = vld [vmem:[%s8 + $0xc] sm:$0xf]
      %v898 = vld [vmem:[%s8 + $0x10] sm:$0xf]
      %v899 = vld [vmem:[%s8 + $0x14] sm:$0xf]
      %v900 = vld [vmem:[%s8 + $0x18] sm:$0xf]
      %v901 = vld [vmem:[%s8 + $0x1c] sm:$0xf]
      %v902 = vld [vmem:[%s8 + $0x20] sm:$0xf]
      %v903 = vld [vmem:[%s8 + $0x24] sm:$0xf]
      %v904 = vld [vmem:[%s8 + $0x28] sm:$0xf]
      %v905 = vld [vmem:[%s8 + $0x2c] sm:$0xf]
      %v906 = vld [vmem:[%s8 + $0x30] sm:$0xf]
      %v907 = vld [vmem:[%s8 + $0x34] sm:$0xf]
      %v908 = vld [vmem:[%s8 + $0x38] sm:$0xf]
      %v909 = vld [vmem:[%s8 + $0x3c] sm:$0xf]
      %v926 = vunpack.c.l.b16 %v894
      %v927 = vunpack.c.l.b16 %v895
      %v928 = vunpack.c.l.b16 %v896
      %v929 = vunpack.c.l.b16 %v897
      %v930 = vunpack.c.l.b16 %v898
      %v931 = vunpack.c.l.b16 %v899
      %v932 = vunpack.c.l.b16 %v900
      %v933 = vunpack.c.l.b16 %v901
      %v934 = vunpack.c.l.b16 %v902
      %v935 = vunpack.c.l.b16 %v903
      %v936 = vunpack.c.l.b16 %v904
      %v937 = vunpack.c.l.b16 %v905
      %v938 = vunpack.c.l.b16 %v906
      %v939 = vunpack.c.l.b16 %v907
      %v940 = vunpack.c.l.b16 %v908
      %v941 = vunpack.c.l.b16 %v909
      %v942 = vpack.c.b16 %v927, %v926
      %v943 = vpack.c.b16 %v929, %v928
      %v944 = vpack.c.b16 %v931, %v930
      %v945 = vpack.c.b16 %v933, %v932
      %v946 = vpack.c.b16 %v935, %v934
      %v947 = vpack.c.b16 %v937, %v936
      %v948 = vpack.c.b16 %v939, %v938
      %v949 = vpack.c.b16 %v941, %v940
      %958 = vmatpush.bf16.msra.mxu0 %v949
      %959 = vmatpush.bf16.msra.mxu0 %v948
      %960 = vmatpush.bf16.msra.mxu0 %v947
      %961 = vmatpush.bf16.msra.mxu0 %v946
      %962 = vmatpush.bf16.msra.mxu0 %v945
      %963 = vmatpush.bf16.msra.mxu0 %v944
      %964 = vmatpush.bf16.msra.mxu0 %v943
      %965 = vmatpush.bf16.msra.mxu0 %v942
      %966 = vmatmul.bf16.gmra.mxu0 %v893
      %v967 = vpop.f32.mrf.mxu0
      %v968 = vadd.f32 0.0, %v967
      %v969 = vpop.f32.mrf.mxu0
      %970 = vdwg.mxu0
      %v987 = vunpack.c.l.b16 %v877
      %v988 = vunpack.c.l.b16 %v878
      %v989 = vunpack.c.l.b16 %v879
      %v990 = vunpack.c.l.b16 %v880
      %v991 = vunpack.c.l.b16 %v881
      %v992 = vunpack.c.l.b16 %v882
      %v993 = vunpack.c.l.b16 %v883
      %v994 = vunpack.c.l.b16 %v884
      %v995 = vunpack.c.l.b16 %v885
      %v996 = vunpack.c.l.b16 %v886
      %v997 = vunpack.c.l.b16 %v887
      %v998 = vunpack.c.l.b16 %v888
      %v999 = vunpack.c.l.b16 %v889
      %v1000 = vunpack.c.l.b16 %v890
      %v1001 = vunpack.c.l.b16 %v891
      %v1002 = vunpack.c.l.b16 %v892
      %v1003 = vpack.c.b16 %v988, %v987
      %v1004 = vpack.c.b16 %v990, %v989
      %v1005 = vpack.c.b16 %v992, %v991
      %v1006 = vpack.c.b16 %v994, %v993
      %v1007 = vpack.c.b16 %v996, %v995
      %v1008 = vpack.c.b16 %v998, %v997
      %v1009 = vpack.c.b16 %v1000, %v999
      %v1010 = vpack.c.b16 %v1002, %v1001
      %1019 = vmatpush.bf16.msra.mxu0 %v1010
      %1020 = vmatpush.bf16.msra.mxu0 %v1009
      %1021 = vmatpush.bf16.msra.mxu0 %v1008
      %1022 = vmatpush.bf16.msra.mxu0 %v1007
      %1023 = vmatpush.bf16.msra.mxu0 %v1006
      %1024 = vmatpush.bf16.msra.mxu0 %v1005
      %1025 = vmatpush.bf16.msra.mxu0 %v1004
      %1026 = vmatpush.bf16.msra.mxu0 %v1003
      %1027 = vmatmul.bf16.gmra.mxu0 %v876
      %v1028 = vpop.f32.mrf.mxu0
      %v1029 = vadd.f32 %v968, %v1028
      %v1030 = vpop.f32.mrf.mxu0
      %1031 = vdwg.mxu0
      %v1032 = vld [vmem:[%s2] sm:$0x1]
      %v1033 = vld [vmem:[%s9] sm:$0xf]
      %v1034 = vld [vmem:[%s9 + $0x4] sm:$0xf]
      %v1035 = vld [vmem:[%s9 + $0x8] sm:$0xf]
      %v1036 = vld [vmem:[%s9 + $0xc] sm:$0xf]
      %v1037 = vld [vmem:[%s9 + $0x10] sm:$0xf]
      %v1038 = vld [vmem:[%s9 + $0x14] sm:$0xf]
      %v1039 = vld [vmem:[%s9 + $0x18] sm:$0xf]
      %v1040 = vld [vmem:[%s9 + $0x1c] sm:$0xf]
      %v1041 = vld [vmem:[%s9 + $0x20] sm:$0xf]
      %v1042 = vld [vmem:[%s9 + $0x24] sm:$0xf]
      %v1043 = vld [vmem:[%s9 + $0x28] sm:$0xf]
      %v1044 = vld [vmem:[%s9 + $0x2c] sm:$0xf]
      %v1045 = vld [vmem:[%s9 + $0x30] sm:$0xf]
      %v1046 = vld [vmem:[%s9 + $0x34] sm:$0xf]
      %v1047 = vld [vmem:[%s9 + $0x38] sm:$0xf]
      %v1048 = vld [vmem:[%s9 + $0x3c] sm:$0xf]
      %v1065 = vunpack.c.l.b16 %v1033
      %v1066 = vunpack.c.l.b16 %v1034
      %v1067 = vunpack.c.l.b16 %v1035
      %v1068 = vunpack.c.l.b16 %v1036
      %v1069 = vunpack.c.l.b16 %v1037
      %v1070 = vunpack.c.l.b16 %v1038
      %v1071 = vunpack.c.l.b16 %v1039
      %v1072 = vunpack.c.l.b16 %v1040
      %v1073 = vunpack.c.l.b16 %v1041
      %v1074 = vunpack.c.l.b16 %v1042
      %v1075 = vunpack.c.l.b16 %v1043
      %v1076 = vunpack.c.l.b16 %v1044
      %v1077 = vunpack.c.l.b16 %v1045
      %v1078 = vunpack.c.l.b16 %v1046
      %v1079 = vunpack.c.l.b16 %v1047
      %v1080 = vunpack.c.l.b16 %v1048
      %v1081 = vpack.c.b16 %v1066, %v1065
      %v1082 = vpack.c.b16 %v1068, %v1067
      %v1083 = vpack.c.b16 %v1070, %v1069
      %v1084 = vpack.c.b16 %v1072, %v1071
      %v1085 = vpack.c.b16 %v1074, %v1073
      %v1086 = vpack.c.b16 %v1076, %v1075
      %v1087 = vpack.c.b16 %v1078, %v1077
      %v1088 = vpack.c.b16 %v1080, %v1079
      %1097 = vmatpush.bf16.msra.mxu0 %v1088
      %1098 = vmatpush.bf16.msra.mxu0 %v1087
      %1099 = vmatpush.bf16.msra.mxu0 %v1086
      %1100 = vmatpush.bf16.msra.mxu0 %v1085
      %1101 = vmatpush.bf16.msra.mxu0 %v1084
      %1102 = vmatpush.bf16.msra.mxu0 %v1083
      %1103 = vmatpush.bf16.msra.mxu0 %v1082
      %1104 = vmatpush.bf16.msra.mxu0 %v1081
      %1105 = vmatmul.bf16.gmra.mxu0 %v1032
      %v1106 = vpop.f32.mrf.mxu0
      %v1107 = vadd.f32 0.0, %v1106
      %v1108 = vpop.f32.mrf.mxu0
      %1109 = vdwg.mxu0
      %v1110 = vadd.f32 %v1029, %v1107
      %v1111 = vld [vmem:[%s10] sm:$0x1]
      %v1113 = vperm.slane %v1111, 0
      %v1115 = vadd.f32 %v1110, %v1113
      %v1116 = vmax.f32 %v1115, 0.0
      %v1117 = vpack.c.bf16 %v1116, %v1116
      %v1118 = vld [vmem:[%s11] sm:$0xf]
      %v1119 = vld [vmem:[%s11 + $0x4] sm:$0xf]
      %v1120 = vld [vmem:[%s11 + $0x8] sm:$0xf]
      %v1121 = vld [vmem:[%s11 + $0xc] sm:$0xf]
      %v1122 = vld [vmem:[%s11 + $0x10] sm:$0xf]
      %v1123 = vld [vmem:[%s11 + $0x14] sm:$0xf]
      %v1124 = vld [vmem:[%s11 + $0x18] sm:$0xf]
      %v1125 = vld [vmem:[%s11 + $0x1c] sm:$0xf]
      %v1126 = vld [vmem:[%s11 + $0x20] sm:$0xf]
      %v1127 = vld [vmem:[%s11 + $0x24] sm:$0xf]
      %v1128 = vld [vmem:[%s11 + $0x28] sm:$0xf]
      %v1129 = vld [vmem:[%s11 + $0x2c] sm:$0xf]
      %v1130 = vld [vmem:[%s11 + $0x30] sm:$0xf]
      %v1131 = vld [vmem:[%s11 + $0x34] sm:$0xf]
      %v1132 = vld [vmem:[%s11 + $0x38] sm:$0xf]
      %v1133 = vld [vmem:[%s11 + $0x3c] sm:$0xf]
      %v1134 = vld [vmem:[%s12] sm:$0x1]
      %v1136 = vperm.slane %v1134, 0
      %v1154 = vunpack.c.l.b16 %v1118
      %v1155 = vunpack.c.l.b16 %v1119
      %v1156 = vunpack.c.l.b16 %v1120
      %v1157 = vunpack.c.l.b16 %v1121
      %v1158 = vunpack.c.l.b16 %v1122
      %v1159 = vunpack.c.l.b16 %v1123
      %v1160 = vunpack.c.l.b16 %v1124
      %v1161 = vunpack.c.l.b16 %v1125
      %v1162 = vunpack.c.l.b16 %v1126
      %v1163 = vunpack.c.l.b16 %v1127
      %v1164 = vunpack.c.l.b16 %v1128
      %v1165 = vunpack.c.l.b16 %v1129
      %v1166 = vunpack.c.l.b16 %v1130
      %v1167 = vunpack.c.l.b16 %v1131
      %v1168 = vunpack.c.l.b16 %v1132
      %v1169 = vunpack.c.l.b16 %v1133
      %v1170 = vpack.c.b16 %v1155, %v1154
      %v1171 = vpack.c.b16 %v1157, %v1156
      %v1172 = vpack.c.b16 %v1159, %v1158
      %v1173 = vpack.c.b16 %v1161, %v1160
      %v1174 = vpack.c.b16 %v1163, %v1162
      %v1175 = vpack.c.b16 %v1165, %v1164
      %v1176 = vpack.c.b16 %v1167, %v1166
      %v1177 = vpack.c.b16 %v1169, %v1168
      %1186 = vmatpush.bf16.msra.mxu0 %v1177
      %1187 = vmatpush.bf16.msra.mxu0 %v1176
      %1188 = vmatpush.bf16.msra.mxu0 %v1175
      %1189 = vmatpush.bf16.msra.mxu0 %v1174
      %1190 = vmatpush.bf16.msra.mxu0 %v1173
      %1191 = vmatpush.bf16.msra.mxu0 %v1172
      %1192 = vmatpush.bf16.msra.mxu0 %v1171
      %1193 = vmatpush.bf16.msra.mxu0 %v1170
      %1194 = vmatmul.bf16.gmra.mxu0 %v1117
      %v1195 = vpop.f32.mrf.mxu0
      %v1196 = vadd.f32 %v1136, %v1195
      %v1197 = vpop.f32.mrf.mxu0
      %1198 = vdwg.mxu0
      %1199 = vst [vmem:[#allocation3] sm:$0x3] %v1196
    $region61: #{_forward_impl.1} parent=1 // pred_fallthru
      _
    // Predicated region
    $region62: #{_forward_impl.1} parent=1 // pred_check
      _
    $region63: #{_forward_impl.1} parent=1 // pred_check_branch
      %1201 = sbr.rel (0) target = $region65
    $region64: #{_forward_impl.1} parent=1 // pred_region
      %1203 = vsyncadd [#allocation4], 0
      %s1205 = sshll.u32 [#allocation3], 4
      %s1206 = int_to_ptr.vmem [resolvable:$true] %s1205
      %s1207 = sshll.u32 %s13, 4
      %s1208 = int_to_ptr.hbm [resolvable:$true] %s1207
      %1210 = dma.vmem_to_hbm [thread:$0]  %s1206, 32, %s1208, [#allocation4]
    $region65: #{_forward_impl.1} parent=1 // pred_fallthru
      _
    // Predicated region
    $region66: #{_forward_impl.1} parent=1 // pred_check
      _
    $region67: #{_forward_impl.1} parent=1 // pred_check_branch
      %1212 = sbr.rel (0) target = $region69
    $region68: #{_forward_impl.1} parent=1 // pred_region
      %1214 = dma.done [#allocation4], 32
    $region69: #{_forward_impl.1} parent=1 // pred_fallthru
      _
    %1215 = vsyncpa [#allocation4], 1

// kernel: _forward_impl.1
$region0: #{_forward_impl.1}
  #allocation0 [shape = 'u32[]', space=smem, size = 0x4, offset = 0x4, fixed_abs, tag = 'smem constant byte address 0x4 - core index']
  #allocation1 [shape = 'u32[72,128]{1,0:T(1,128)}', space=vmem, size = 0x9000, scoped, tag = 'internal scratch']
  #allocation2 [shape = 'f32[2,128]{1,0:T(2,128)}', space=vmem, size = 0x400, scoped, tag = 'scratch operand']
  %s0 = inlined_call_operand.vmem [shape: f32[2,1024], index: 0, kind: input, shape index: {}]
  %s1 = inlined_call_operand.vmem [shape: bf16[2,256], index: 1, kind: input, shape index: {}]
  %s2 = inlined_call_operand.vmem [shape: bf16[2,128], index: 2, kind: input, shape index: {}]
  %s3 = inlined_call_operand.vmem [shape: bf16[1024,128], index: 3, kind: input, shape index: {}]
  %s4 = inlined_call_operand.vmem [shape: f32[1,128], index: 4, kind: input, shape index: {}]
  %s5 = inlined_call_operand.vmem [shape: bf16[256,128], index: 5, kind: input, shape index: {}]
  %s6 = inlined_call_operand.vmem [shape: f32[1,128], index: 6, kind: input, shape index: {}]
  %s7 = inlined_call_operand.vmem [shape: bf16[128,128], index: 7, kind: input, shape index: {}]
  %s8 = inlined_call_operand.vmem [shape: bf16[128,128], index: 8, kind: input, shape index: {}]
  %s9 = inlined_call_operand.vmem [shape: bf16[128,128], index: 9, kind: input, shape index: {}]
  %s10 = inlined_call_operand.vmem [shape: f32[1,128], index: 10, kind: input, shape index: {}]
  %s11 = inlined_call_operand.vmem [shape: bf16[128,128], index: 11, kind: input, shape index: {}]
  %s12 = inlined_call_operand.vmem [shape: f32[1,128], index: 12, kind: input, shape index: {}]
  %s13 = inlined_call_operand.hbm [shape: f32[2,128], index: 13, kind: output, shape index: {}]
  %s14 = sld [smem:[#allocation0]]
  $region70: #{_forward_impl.1} parent=0
    _
  %s16 = ssub.s32 1, %s14
  %s17 = scalar_select 0, %s16, %s14
  $region1: #{_forward_impl.1} parent=0
    #allocation3 [shape = 'u8[1024]{0}', space=vmem, size = 0x400, scoped, tag = 'output window, operand 0, single buffered']
    #allocation4 [shape = 's32[1]{0}', space=sflag, size = 0x4, scoped, tag = 'scoped memory for _forward_impl.1']
    %18 = vsyncpa [#allocation4], 0
    // Predicated region
    $region2: #{_forward_impl.1} parent=1 // pred_check
      _
    $region3: #{_forward_impl.1} parent=1 // pred_check_branch
      %20 = sbr.rel (0) target = $region5
    $region4: #{_forward_impl.1} parent=1 // pred_region
      _
    $region5: #{_forward_impl.1} parent=1 // pred_fallthru
      _
    // Predicated region
    $region6: #{_forward_impl.1} parent=1 // pred_check
      _
    $region7: #{_forward_impl.1} parent=1 // pred_check_branch
      %22 = sbr.rel (0) target = $region9
    $region8: #{_forward_impl.1} parent=1 // pred_region
      _
    $region9: #{_forward_impl.1} parent=1 // pred_fallthru
      _
    // Predicated region
    $region10: #{_forward_impl.1} parent=1 // pred_check
      _
    $region11: #{_forward_impl.1} parent=1 // pred_check_branch
      %24 = sbr.rel (0) target = $region13
    $region12: #{_forward_impl.1} parent=1 // pred_region
      _
    $region13: #{_forward_impl.1} parent=1 // pred_fallthru
      _
    // Predicated region
    $region14: #{_forward_impl.1} parent=1 // pred_check
      _
    $region15: #{_forward_impl.1} parent=1 // pred_check_branch
      %26 = sbr.rel (0) target = $region17
    $region16: #{_forward_impl.1} parent=1 // pred_region
      _
    $region17: #{_forward_impl.1} parent=1 // pred_fallthru
      _
    // Predicated region
    $region18: #{_forward_impl.1} parent=1 // pred_check
      _
    $region19: #{_forward_impl.1} parent=1 // pred_check_branch
      %28 = sbr.rel (0) target = $region21
    $region20: #{_forward_impl.1} parent=1 // pred_region
      _
    $region21: #{_forward_impl.1} parent=1 // pred_fallthru
      _
    // Predicated region
    $region22: #{_forward_impl.1} parent=1 // pred_check
      _
    $region23: #{_forward_impl.1} parent=1 // pred_check_branch
      %30 = sbr.rel (0) target = $region25
    $region24: #{_forward_impl.1} parent=1 // pred_region
      _
    $region25: #{_forward_impl.1} parent=1 // pred_fallthru
      _
    // Predicated region
    $region26: #{_forward_impl.1} parent=1 // pred_check
      _
    $region27: #{_forward_impl.1} parent=1 // pred_check_branch
      %32 = sbr.rel (0) target = $region29
    $region28: #{_forward_impl.1} parent=1 // pred_region
      _
    $region29: #{_forward_impl.1} parent=1 // pred_fallthru
      _
    // Predicated region
    $region30: #{_forward_impl.1} parent=1 // pred_check
      _
    $region31: #{_forward_impl.1} parent=1 // pred_check_branch
      %34 = sbr.rel (0) target = $region33
    $region32: #{_forward_impl.1} parent=1 // pred_region
      _
    $region33: #{_forward_impl.1} parent=1 // pred_fallthru
      _
    // Predicated region
    $region34: #{_forward_impl.1} parent=1 // pred_check
      _
    $region35: #{_forward_impl.1} parent=1 // pred_check_branch
      %36 = sbr.rel (0) target = $region37
    $region36: #{_forward_impl.1} parent=1 // pred_region
      _
    $region37: #{_forward_impl.1} parent=1 // pred_fallthru
      _
    // Predicated region
    $region38: #{_forward_impl.1} parent=1 // pred_check
      _
    $region39: #{_forward_impl.1} parent=1 // pred_check_branch
      %38 = sbr.rel (0) target = $region41
    $region40: #{_forward_impl.1} parent=1 // pred_region
      _
    $region41: #{_forward_impl.1} parent=1 // pred_fallthru
      _
    // Predicated region
    $region42: #{_forward_impl.1} parent=1 // pred_check
      _
    $region43: #{_forward_impl.1} parent=1 // pred_check_branch
      %40 = sbr.rel (0) target = $region45
    $region44: #{_forward_impl.1} parent=1 // pred_region
      _
    $region45: #{_forward_impl.1} parent=1 // pred_fallthru
      _
    // Predicated region
    $region46: #{_forward_impl.1} parent=1 // pred_check
      _
    $region47: #{_forward_impl.1} parent=1 // pred_check_branch
      %42 = sbr.rel (0) target = $region49
    $region48: #{_forward_impl.1} parent=1 // pred_region
      _
    $region49: #{_forward_impl.1} parent=1 // pred_fallthru
      _
    // Predicated region
    $region50: #{_forward_impl.1} parent=1 // pred_check
      _
    $region51: #{_forward_impl.1} parent=1 // pred_check_branch
      %44 = sbr.rel (0) target = $region53
    $region52: #{_forward_impl.1} parent=1 // pred_region
      _
    $region53: #{_forward_impl.1} parent=1 // pred_fallthru
      _
    %p45 = scmp.eq.s32.totalorder 0, 0
    // Predicated region
    $region54: #{_forward_impl.1} parent=1 // pred_check
      %p46 = pneg %p45
    $region55: #{_forward_impl.1} parent=1 // pred_check_branch
      %48 = sbr.rel (%p46) target = $region57
    $region56: #{_forward_impl.1} parent=1 // pred_region
      %49 = vst [vmem:[#allocation2] sm:$0x3] 0.0
    $region57: #{_forward_impl.1} parent=1 // pred_fallthru
      _
    %v50 = vld [vmem:[#allocation2] sm:$0x3]
    %v51 = vld [vmem:[%s0] sm:$0xff]
    %v52 = vld [vmem:[%s0 + $0x8] sm:$0xff]
    %55 = vst [vmem:[#allocation1] ss:$4 sm:$0xff] %v51
    %s56 = scalar_lea.vmem [#allocation1], 32
    %57 = vst [vmem:[%s56] ss:$4 sm:$0xff] %v52
    %v58 = vld.sshfl [vmem:[#allocation1] sm:$0xff pattern:$0x73625140]
    %v59 = vld.sshfl [vmem:[#allocation1 + $0x8] sm:$0xff pattern:$0x73625140]
    %v60 = vld.sshfl [vmem:[#allocation1 + $0x10] sm:$0xff pattern:$0x73625140]
    %v61 = vld.sshfl [vmem:[#allocation1 + $0x18] sm:$0xff pattern:$0x73625140]
    %v62 = vld.sshfl [vmem:[#allocation1 + $0x20] sm:$0xff pattern:$0x73625140]
    %v63 = vld.sshfl [vmem:[#allocation1 + $0x28] sm:$0xff pattern:$0x73625140]
    %v64 = vld.sshfl [vmem:[#allocation1 + $0x30] sm:$0xff pattern:$0x73625140]
    %v65 = vld.sshfl [vmem:[#allocation1 + $0x38] sm:$0xff pattern:$0x73625140]
    %v74 = vpack.c.bf16 %v58, %v58
    %v75 = vpack.c.bf16 %v59, %v59
    %v76 = vpack.c.bf16 %v60, %v60
    %v77 = vpack.c.bf16 %v61, %v61
    %v78 = vpack.c.bf16 %v62, %v62
    %v79 = vpack.c.bf16 %v63, %v63
    %v80 = vpack.c.bf16 %v64, %v64
    %v81 = vpack.c.bf16 %v65, %v65
    %v82 = vld [vmem:[%s3] sm:$0xf]
    %v83 = vld [vmem:[%s3 + $0x4] sm:$0xf]
    %v84 = vld [vmem:[%s3 + $0x8] sm:$0xf]
    %v85 = vld [vmem:[%s3 + $0xc] sm:$0xf]
    %v86 = vld [vmem:[%s3 + $0x10] sm:$0xf]
    %v87 = vld [vmem:[%s3 + $0x14] sm:$0xf]
    %v88 = vld [vmem:[%s3 + $0x18] sm:$0xf]
    %v89 = vld [vmem:[%s3 + $0x1c] sm:$0xf]
    %v90 = vld [vmem:[%s3 + $0x20] sm:$0xf]
    %v91 = vld [vmem:[%s3 + $0x24] sm:$0xf]
    %v92 = vld [vmem:[%s3 + $0x28] sm:$0xf]
    %v93 = vld [vmem:[%s3 + $0x2c] sm:$0xf]
    %v94 = vld [vmem:[%s3 + $0x30] sm:$0xf]
    %v95 = vld [vmem:[%s3 + $0x34] sm:$0xf]
    %v96 = vld [vmem:[%s3 + $0x38] sm:$0xf]
    %v97 = vld [vmem:[%s3 + $0x3c] sm:$0xf]
    %v98 = vld [vmem:[%s3 + $0x40] sm:$0xf]
    %v99 = vld [vmem:[%s3 + $0x44] sm:$0xf]
    %v100 = vld [vmem:[%s3 + $0x48] sm:$0xf]
    %v101 = vld [vmem:[%s3 + $0x4c] sm:$0xf]
    %v102 = vld [vmem:[%s3 + $0x50] sm:$0xf]
    %v103 = vld [vmem:[%s3 + $0x54] sm:$0xf]
    %v104 = vld [vmem:[%s3 + $0x58] sm:$0xf]
    %v105 = vld [vmem:[%s3 + $0x5c] sm:$0xf]
    %v106 = vld [vmem:[%s3 + $0x60] sm:$0xf]
    %v107 = vld [vmem:[%s3 + $0x64] sm:$0xf]
    %v108 = vld [vmem:[%s3 + $0x68] sm:$0xf]
    %v109 = vld [vmem:[%s3 + $0x6c] sm:$0xf]
    %v110 = vld [vmem:[%s3 + $0x70] sm:$0xf]
    %v111 = vld [vmem:[%s3 + $0x74] sm:$0xf]
    %v112 = vld [vmem:[%s3 + $0x78] sm:$0xf]
    %v113 = vld [vmem:[%s3 + $0x7c] sm:$0xf]
    %v114 = vld [vmem:[%s3 + $0x80] sm:$0xf]
    %v115 = vld [vmem:[%s3 + $0x84] sm:$0xf]
    %v116 = vld [vmem:[%s3 + $0x88] sm:$0xf]
    %v117 = vld [vmem:[%s3 + $0x8c] sm:$0xf]
    %v118 = vld [vmem:[%s3 + $0x90] sm:$0xf]
    %v119 = vld [vmem:[%s3 + $0x94] sm:$0xf]
    %v120 = vld [vmem:[%s3 + $0x98] sm:$0xf]
    %v121 = vld [vmem:[%s3 + $0x9c] sm:$0xf]
    %v122 = vld [vmem:[%s3 + $0xa0] sm:$0xf]
    %v123 = vld [vmem:[%s3 + $0xa4] sm:$0xf]
    %v124 = vld [vmem:[%s3 + $0xa8] sm:$0xf]
    %v125 = vld [vmem:[%s3 + $0xac] sm:$0xf]
    %v126 = vld [vmem:[%s3 + $0xb0] sm:$0xf]
    %v127 = vld [vmem:[%s3 + $0xb4] sm:$0xf]
    %v128 = vld [vmem:[%s3 + $0xb8] sm:$0xf]
    %v129 = vld [vmem:[%s3 + $0xbc] sm:$0xf]
    %v130 = vld [vmem:[%s3 + $0xc0] sm:$0xf]
    %v131 = vld [vmem:[%s3 + $0xc4] sm:$0xf]
    %v132 = vld [vmem:[%s3 + $0xc8] sm:$0xf]
    %v133 = vld [vmem:[%s3 + $0xcc] sm:$0xf]
    %v134 = vld [vmem:[%s3 + $0xd0] sm:$0xf]
    %v135 = vld [vmem:[%s3 + $0xd4] sm:$0xf]
    %v136 = vld [vmem:[%s3 + $0xd8] sm:$0xf]
    %v137 = vld [vmem:[%s3 + $0xdc] sm:$0xf]
    %v138 = vld [vmem:[%s3 + $0xe0] sm:$0xf]
    %v139 = vld [vmem:[%s3 + $0xe4] sm:$0xf]
    %v140 = vld [vmem:[%s3 + $0xe8] sm:$0xf]
    %v141 = vld [vmem:[%s3 + $0xec] sm:$0xf]
    %v142 = vld [vmem:[%s3 + $0xf0] sm:$0xf]
    %v143 = vld [vmem:[%s3 + $0xf4] sm:$0xf]
    %v144 = vld [vmem:[%s3 + $0xf8] sm:$0xf]
    %v145 = vld [vmem:[%s3 + $0xfc] sm:$0xf]
    %v146 = vld [vmem:[%s3 + $0x100] sm:$0xf]
    %v147 = vld [vmem:[%s3 + $0x104] sm:$0xf]
    %v148 = vld [vmem:[%s3 + $0x108] sm:$0xf]
    %v149 = vld [vmem:[%s3 + $0x10c] sm:$0xf]
    %v150 = vld [vmem:[%s3 + $0x110] sm:$0xf]
    %v151 = vld [vmem:[%s3 + $0x114] sm:$0xf]
    %v152 = vld [vmem:[%s3 + $0x118] sm:$0xf]
    %v153 = vld [vmem:[%s3 + $0x11c] sm:$0xf]
    %v154 = vld [vmem:[%s3 + $0x120] sm:$0xf]
    %v155 = vld [vmem:[%s3 + $0x124] sm:$0xf]
    %v156 = vld [vmem:[%s3 + $0x128] sm:$0xf]
    %v157 = vld [vmem:[%s3 + $0x12c] sm:$0xf]
    %v158 = vld [vmem:[%s3 + $0x130] sm:$0xf]
    %v159 = vld [vmem:[%s3 + $0x134] sm:$0xf]
    %v160 = vld [vmem:[%s3 + $0x138] sm:$0xf]
    %v161 = vld [vmem:[%s3 + $0x13c] sm:$0xf]
    %v162 = vld [vmem:[%s3 + $0x140] sm:$0xf]
    %v163 = vld [vmem:[%s3 + $0x144] sm:$0xf]
    %v164 = vld [vmem:[%s3 + $0x148] sm:$0xf]
    %v165 = vld [vmem:[%s3 + $0x14c] sm:$0xf]
    %v166 = vld [vmem:[%s3 + $0x150] sm:$0xf]
    %v167 = vld [vmem:[%s3 + $0x154] sm:$0xf]
    %v168 = vld [vmem:[%s3 + $0x158] sm:$0xf]
    %v169 = vld [vmem:[%s3 + $0x15c] sm:$0xf]
    %v170 = vld [vmem:[%s3 + $0x160] sm:$0xf]
    %v171 = vld [vmem:[%s3 + $0x164] sm:$0xf]
    %v172 = vld [vmem:[%s3 + $0x168] sm:$0xf]
    %v173 = vld [vmem:[%s3 + $0x16c] sm:$0xf]
    %v174 = vld [vmem:[%s3 + $0x170] sm:$0xf]
    %v175 = vld [vmem:[%s3 + $0x174] sm:$0xf]
    %v176 = vld [vmem:[%s3 + $0x178] sm:$0xf]
    %v177 = vld [vmem:[%s3 + $0x17c] sm:$0xf]
    %v178 = vld [vmem:[%s3 + $0x180] sm:$0xf]
    %v179 = vld [vmem:[%s3 + $0x184] sm:$0xf]
    %v180 = vld [vmem:[%s3 + $0x188] sm:$0xf]
    %v181 = vld [vmem:[%s3 + $0x18c] sm:$0xf]
    %v182 = vld [vmem:[%s3 + $0x190] sm:$0xf]
    %v183 = vld [vmem:[%s3 + $0x194] sm:$0xf]
    %v184 = vld [vmem:[%s3 + $0x198] sm:$0xf]
    %v185 = vld [vmem:[%s3 + $0x19c] sm:$0xf]
    %v186 = vld [vmem:[%s3 + $0x1a0] sm:$0xf]
    %v187 = vld [vmem:[%s3 + $0x1a4] sm:$0xf]
    %v188 = vld [vmem:[%s3 + $0x1a8] sm:$0xf]
    %v189 = vld [vmem:[%s3 + $0x1ac] sm:$0xf]
    %v190 = vld [vmem:[%s3 + $0x1b0] sm:$0xf]
    %v191 = vld [vmem:[%s3 + $0x1b4] sm:$0xf]
    %v192 = vld [vmem:[%s3 + $0x1b8] sm:$0xf]
    %v193 = vld [vmem:[%s3 + $0x1bc] sm:$0xf]
    %v194 = vld [vmem:[%s3 + $0x1c0] sm:$0xf]
    %v195 = vld [vmem:[%s3 + $0x1c4] sm:$0xf]
    %v196 = vld [vmem:[%s3 + $0x1c8] sm:$0xf]
    %v197 = vld [vmem:[%s3 + $0x1cc] sm:$0xf]
    %v198 = vld [vmem:[%s3 + $0x1d0] sm:$0xf]
    %v199 = vld [vmem:[%s3 + $0x1d4] sm:$0xf]
    %v200 = vld [vmem:[%s3 + $0x1d8] sm:$0xf]
    %v201 = vld [vmem:[%s3 + $0x1dc] sm:$0xf]
    %v202 = vld [vmem:[%s3 + $0x1e0] sm:$0xf]
    %v203 = vld [vmem:[%s3 + $0x1e4] sm:$0xf]
    %v204 = vld [vmem:[%s3 + $0x1e8] sm:$0xf]
    %v205 = vld [vmem:[%s3 + $0x1ec] sm:$0xf]
    %v206 = vld [vmem:[%s3 + $0x1f0] sm:$0xf]
    %v207 = vld [vmem:[%s3 + $0x1f4] sm:$0xf]
    %v208 = vld [vmem:[%s3 + $0x1f8] sm:$0xf]
    %v209 = vld [vmem:[%s3 + $0x1fc] sm:$0xf]
    %v338 = vunpack.c.l.b16 %v82
    %v339 = vunpack.c.l.b16 %v83
    %v340 = vunpack.c.l.b16 %v84
    %v341 = vunpack.c.l.b16 %v85
    %v342 = vunpack.c.l.b16 %v86
    %v343 = vunpack.c.l.b16 %v87
    %v344 = vunpack.c.l.b16 %v88
    %v345 = vunpack.c.l.b16 %v89
    %v346 = vunpack.c.l.b16 %v90
    %v347 = vunpack.c.l.b16 %v91
    %v348 = vunpack.c.l.b16 %v92
    %v349 = vunpack.c.l.b16 %v93
    %v350 = vunpack.c.l.b16 %v94
    %v351 = vunpack.c.l.b16 %v95
    %v352 = vunpack.c.l.b16 %v96
    %v353 = vunpack.c.l.b16 %v97
    %v354 = vunpack.c.l.b16 %v98
    %v355 = vunpack.c.l.b16 %v99
    %v356 = vunpack.c.l.b16 %v100
    %v357 = vunpack.c.l.b16 %v101
    %v358 = vunpack.c.l.b16 %v102
    %v359 = vunpack.c.l.b16 %v103
    %v360 = vunpack.c.l.b16 %v104
    %v361 = vunpack.c.l.b16 %v105
    %v362 = vunpack.c.l.b16 %v106
    %v363 = vunpack.c.l.b16 %v107
    %v364 = vunpack.c.l.b16 %v108
    %v365 = vunpack.c.l.b16 %v109
    %v366 = vunpack.c.l.b16 %v110
    %v367 = vunpack.c.l.b16 %v111
    %v368 = vunpack.c.l.b16 %v112
    %v369 = vunpack.c.l.b16 %v113
    %v370 = vunpack.c.l.b16 %v114
    %v371 = vunpack.c.l.b16 %v115
    %v372 = vunpack.c.l.b16 %v116
    %v373 = vunpack.c.l.b16 %v117
    %v374 = vunpack.c.l.b16 %v118
    %v375 = vunpack.c.l.b16 %v119
    %v376 = vunpack.c.l.b16 %v120
    %v377 = vunpack.c.l.b16 %v121
    %v378 = vunpack.c.l.b16 %v122
    %v379 = vunpack.c.l.b16 %v123
    %v380 = vunpack.c.l.b16 %v124
    %v381 = vunpack.c.l.b16 %v125
    %v382 = vunpack.c.l.b16 %v126
    %v383 = vunpack.c.l.b16 %v127
    %v384 = vunpack.c.l.b16 %v128
    %v385 = vunpack.c.l.b16 %v129
    %v386 = vunpack.c.l.b16 %v130
    %v387 = vunpack.c.l.b16 %v131
    %v388 = vunpack.c.l.b16 %v132
    %v389 = vunpack.c.l.b16 %v133
    %v390 = vunpack.c.l.b16 %v134
    %v391 = vunpack.c.l.b16 %v135
    %v392 = vunpack.c.l.b16 %v136
    %v393 = vunpack.c.l.b16 %v137
    %v394 = vunpack.c.l.b16 %v138
    %v395 = vunpack.c.l.b16 %v139
    %v396 = vunpack.c.l.b16 %v140
    %v397 = vunpack.c.l.b16 %v141
    %v398 = vunpack.c.l.b16 %v142
    %v399 = vunpack.c.l.b16 %v143
    %v400 = vunpack.c.l.b16 %v144
    %v401 = vunpack.c.l.b16 %v145
    %v402 = vunpack.c.l.b16 %v146
    %v403 = vunpack.c.l.b16 %v147
    %v404 = vunpack.c.l.b16 %v148
    %v405 = vunpack.c.l.b16 %v149
    %v406 = vunpack.c.l.b16 %v150
    %v407 = vunpack.c.l.b16 %v151
    %v408 = vunpack.c.l.b16 %v152
    %v409 = vunpack.c.l.b16 %v153
    %v410 = vunpack.c.l.b16 %v154
    %v411 = vunpack.c.l.b16 %v155
    %v412 = vunpack.c.l.b16 %v156
    %v413 = vunpack.c.l.b16 %v157
    %v414 = vunpack.c.l.b16 %v158
    %v415 = vunpack.c.l.b16 %v159
    %v416 = vunpack.c.l.b16 %v160
    %v417 = vunpack.c.l.b16 %v161
    %v418 = vunpack.c.l.b16 %v162
    %v419 = vunpack.c.l.b16 %v163
    %v420 = vunpack.c.l.b16 %v164
    %v421 = vunpack.c.l.b16 %v165
    %v422 = vunpack.c.l.b16 %v166
    %v423 = vunpack.c.l.b16 %v167
    %v424 = vunpack.c.l.b16 %v168
    %v425 = vunpack.c.l.b16 %v169
    %v426 = vunpack.c.l.b16 %v170
    %v427 = vunpack.c.l.b16 %v171
    %v428 = vunpack.c.l.b16 %v172
    %v429 = vunpack.c.l.b16 %v173
    %v430 = vunpack.c.l.b16 %v174
    %v431 = vunpack.c.l.b16 %v175
    %v432 = vunpack.c.l.b16 %v176
    %v433 = vunpack.c.l.b16 %v177
    %v434 = vunpack.c.l.b16 %v178
    %v435 = vunpack.c.l.b16 %v179
    %v436 = vunpack.c.l.b16 %v180
    %v437 = vunpack.c.l.b16 %v181
    %v438 = vunpack.c.l.b16 %v182
    %v439 = vunpack.c.l.b16 %v183
    %v440 = vunpack.c.l.b16 %v184
    %v441 = vunpack.c.l.b16 %v185
    %v442 = vunpack.c.l.b16 %v186
    %v443 = vunpack.c.l.b16 %v187
    %v444 = vunpack.c.l.b16 %v188
    %v445 = vunpack.c.l.b16 %v189
    %v446 = vunpack.c.l.b16 %v190
    %v447 = vunpack.c.l.b16 %v191
    %v448 = vunpack.c.l.b16 %v192
    %v449 = vunpack.c.l.b16 %v193
    %v450 = vunpack.c.l.b16 %v194
    %v451 = vunpack.c.l.b16 %v195
    %v452 = vunpack.c.l.b16 %v196
    %v453 = vunpack.c.l.b16 %v197
    %v454 = vunpack.c.l.b16 %v198
    %v455 = vunpack.c.l.b16 %v199
    %v456 = vunpack.c.l.b16 %v200
    %v457 = vunpack.c.l.b16 %v201
    %v458 = vunpack.c.l.b16 %v202
    %v459 = vunpack.c.l.b16 %v203
    %v460 = vunpack.c.l.b16 %v204
    %v461 = vunpack.c.l.b16 %v205
    %v462 = vunpack.c.l.b16 %v206
    %v463 = vunpack.c.l.b16 %v207
    %v464 = vunpack.c.l.b16 %v208
    %v465 = vunpack.c.l.b16 %v209
    %v466 = vpack.c.b16 %v339, %v338
    %v467 = vpack.c.b16 %v341, %v340
    %v468 = vpack.c.b16 %v343, %v342
    %v469 = vpack.c.b16 %v345, %v344
    %v470 = vpack.c.b16 %v347, %v346
    %v471 = vpack.c.b16 %v349, %v348
    %v472 = vpack.c.b16 %v351, %v350
    %v473 = vpack.c.b16 %v353, %v352
    %v474 = vpack.c.b16 %v355, %v354
    %v475 = vpack.c.b16 %v357, %v356
    %v476 = vpack.c.b16 %v359, %v358
    %v477 = vpack.c.b16 %v361, %v360
    %v478 = vpack.c.b16 %v363, %v362
    %v479 = vpack.c.b16 %v365, %v364
    %v480 = vpack.c.b16 %v367, %v366
    %v481 = vpack.c.b16 %v369, %v368
    %v482 = vpack.c.b16 %v371, %v370
    %v483 = vpack.c.b16 %v373, %v372
    %v484 = vpack.c.b16 %v375, %v374
    %v485 = vpack.c.b16 %v377, %v376
    %v486 = vpack.c.b16 %v379, %v378
    %v487 = vpack.c.b16 %v381, %v380
    %v488 = vpack.c.b16 %v383, %v382
    %v489 = vpack.c.b16 %v385, %v384
    %v490 = vpack.c.b16 %v387, %v386
    %v491 = vpack.c.b16 %v389, %v388
    %v492 = vpack.c.b16 %v391, %v390
    %v493 = vpack.c.b16 %v393, %v392
    %v494 = vpack.c.b16 %v395, %v394
    %v495 = vpack.c.b16 %v397, %v396
    %v496 = vpack.c.b16 %v399, %v398
    %v497 = vpack.c.b16 %v401, %v400
    %v498 = vpack.c.b16 %v403, %v402
    %v499 = vpack.c.b16 %v405, %v404
    %v500 = vpack.c.b16 %v407, %v406
    %v501 = vpack.c.b16 %v409, %v408
    %v502 = vpack.c.b16 %v411, %v410
    %v503 = vpack.c.b16 %v413, %v412
    %v504 = vpack.c.b16 %v415, %v414
    %v505 = vpack.c.b16 %v417, %v416
    %v506 = vpack.c.b16 %v419, %v418
    %v507 = vpack.c.b16 %v421, %v420
    %v508 = vpack.c.b16 %v423, %v422
    %v509 = vpack.c.b16 %v425, %v424
    %v510 = vpack.c.b16 %v427, %v426
    %v511 = vpack.c.b16 %v429, %v428
    %v512 = vpack.c.b16 %v431, %v430
    %v513 = vpack.c.b16 %v433, %v432
    %v514 = vpack.c.b16 %v435, %v434
    %v515 = vpack.c.b16 %v437, %v436
    %v516 = vpack.c.b16 %v439, %v438
    %v517 = vpack.c.b16 %v441, %v440
    %v518 = vpack.c.b16 %v443, %v442
    %v519 = vpack.c.b16 %v445, %v444
    %v520 = vpack.c.b16 %v447, %v446
    %v521 = vpack.c.b16 %v449, %v448
    %v522 = vpack.c.b16 %v451, %v450
    %v523 = vpack.c.b16 %v453, %v452
    %v524 = vpack.c.b16 %v455, %v454
    %v525 = vpack.c.b16 %v457, %v456
    %v526 = vpack.c.b16 %v459, %v458
    %v527 = vpack.c.b16 %v461, %v460
    %v528 = vpack.c.b16 %v463, %v462
    %v529 = vpack.c.b16 %v465, %v464
    %594 = vmatpush.bf16.msra.mxu0 %v473
    %595 = vmatpush.bf16.msra.mxu0 %v472
    %596 = vmatpush.bf16.msra.mxu0 %v471
    %597 = vmatpush.bf16.msra.mxu0 %v470
    %598 = vmatpush.bf16.msra.mxu0 %v469
    %599 = vmatpush.bf16.msra.mxu0 %v468
    %600 = vmatpush.bf16.msra.mxu0 %v467
    %601 = vmatpush.bf16.msra.mxu0 %v466
    %602 = vmatmul.bf16.gmra.mxu0 %v74
    %v603 = vpop.f32.mrf.mxu0
    %v604 = vadd.f32 0.0, %v603
    %v605 = vpop.f32.mrf.mxu0
    %606 = vdwg.mxu0
    %607 = vmatpush.bf16.msra.mxu0 %v481
    %608 = vmatpush.bf16.msra.mxu0 %v480
    %609 = vmatpush.bf16.msra.mxu0 %v479
    %610 = vmatpush.bf16.msra.mxu0 %v478
    %611 = vmatpush.bf16.msra.mxu0 %v477
    %612 = vmatpush.bf16.msra.mxu0 %v476
    %613 = vmatpush.bf16.msra.mxu0 %v475
    %614 = vmatpush.bf16.msra.mxu0 %v474
    %615 = vmatmul.bf16.gmra.mxu0 %v75
    %v616 = vpop.f32.mrf.mxu0
    %v617 = vadd.f32 %v604, %v616
    %v618 = vpop.f32.mrf.mxu0
    %619 = vdwg.mxu0
    %620 = vmatpush.bf16.msra.mxu0 %v489
    %621 = vmatpush.bf16.msra.mxu0 %v488
    %622 = vmatpush.bf16.msra.mxu0 %v487
    %623 = vmatpush.bf16.msra.mxu0 %v486
    %624 = vmatpush.bf16.msra.mxu0 %v485
    %625 = vmatpush.bf16.msra.mxu0 %v484
    %626 = vmatpush.bf16.msra.mxu0 %v483
    %627 = vmatpush.bf16.msra.mxu0 %v482
    %628 = vmatmul.bf16.gmra.mxu0 %v76
    %v629 = vpop.f32.mrf.mxu0
    %v630 = vadd.f32 %v617, %v629
    %v631 = vpop.f32.mrf.mxu0
    %632 = vdwg.mxu0
    %633 = vmatpush.bf16.msra.mxu0 %v497
    %634 = vmatpush.bf16.msra.mxu0 %v496
    %635 = vmatpush.bf16.msra.mxu0 %v495
    %636 = vmatpush.bf16.msra.mxu0 %v494
    %637 = vmatpush.bf16.msra.mxu0 %v493
    %638 = vmatpush.bf16.msra.mxu0 %v492
    %639 = vmatpush.bf16.msra.mxu0 %v491
    %640 = vmatpush.bf16.msra.mxu0 %v490
    %641 = vmatmul.bf16.gmra.mxu0 %v77
    %v642 = vpop.f32.mrf.mxu0
    %v643 = vadd.f32 %v630, %v642
    %v644 = vpop.f32.mrf.mxu0
    %645 = vdwg.mxu0
    %646 = vmatpush.bf16.msra.mxu0 %v505
    %647 = vmatpush.bf16.msra.mxu0 %v504
    %648 = vmatpush.bf16.msra.mxu0 %v503
    %649 = vmatpush.bf16.msra.mxu0 %v502
    %650 = vmatpush.bf16.msra.mxu0 %v501
    %651 = vmatpush.bf16.msra.mxu0 %v500
    %652 = vmatpush.bf16.msra.mxu0 %v499
    %653 = vmatpush.bf16.msra.mxu0 %v498
    %654 = vmatmul.bf16.gmra.mxu0 %v78
    %v655 = vpop.f32.mrf.mxu0
    %v656 = vadd.f32 %v643, %v655
    %v657 = vpop.f32.mrf.mxu0
    %658 = vdwg.mxu0
    %659 = vmatpush.bf16.msra.mxu0 %v513
    %660 = vmatpush.bf16.msra.mxu0 %v512
    %661 = vmatpush.bf16.msra.mxu0 %v511
    %662 = vmatpush.bf16.msra.mxu0 %v510
    %663 = vmatpush.bf16.msra.mxu0 %v509
    %664 = vmatpush.bf16.msra.mxu0 %v508
    %665 = vmatpush.bf16.msra.mxu0 %v507
    %666 = vmatpush.bf16.msra.mxu0 %v506
    %667 = vmatmul.bf16.gmra.mxu0 %v79
    %v668 = vpop.f32.mrf.mxu0
    %v669 = vadd.f32 %v656, %v668
    %v670 = vpop.f32.mrf.mxu0
    %671 = vdwg.mxu0
    %672 = vmatpush.bf16.msra.mxu0 %v521
    %673 = vmatpush.bf16.msra.mxu0 %v520
    %674 = vmatpush.bf16.msra.mxu0 %v519
    %675 = vmatpush.bf16.msra.mxu0 %v518
    %676 = vmatpush.bf16.msra.mxu0 %v517
    %677 = vmatpush.bf16.msra.mxu0 %v516
    %678 = vmatpush.bf16.msra.mxu0 %v515
    %679 = vmatpush.bf16.msra.mxu0 %v514
    %680 = vmatmul.bf16.gmra.mxu0 %v80
    %v681 = vpop.f32.mrf.mxu0
    %v682 = vadd.f32 %v669, %v681
    %v683 = vpop.f32.mrf.mxu0
    %684 = vdwg.mxu0
    %685 = vmatpush.bf16.msra.mxu0 %v529
    %686 = vmatpush.bf16.msra.mxu0 %v528
    %687 = vmatpush.bf16.msra.mxu0 %v527
    %688 = vmatpush.bf16.msra.mxu0 %v526
    %689 = vmatpush.bf16.msra.mxu0 %v525
    %690 = vmatpush.bf16.msra.mxu0 %v524
    %691 = vmatpush.bf16.msra.mxu0 %v523
    %692 = vmatpush.bf16.msra.mxu0 %v522
    %693 = vmatmul.bf16.gmra.mxu0 %v81
    %v694 = vpop.f32.mrf.mxu0
    %v695 = vadd.f32 %v682, %v694
    %v696 = vpop.f32.mrf.mxu0
    %697 = vdwg.mxu0
    %v698 = vadd.f32 %v50, %v695
    %699 = vst [vmem:[#allocation2] sm:$0x3] %v698
    // Predicated region
    $region58: #{_forward_impl.1} parent=1 // pred_check
      %p700 = pneg %p45
    $region59: #{_forward_impl.1} parent=1 // pred_check_branch
      %702 = sbr.rel (%p700) target = $region61
    $region60: #{_forward_impl.1} parent=1 // pred_region
      %v703 = vld [vmem:[#allocation2] sm:$0x3]
      %v704 = vld [vmem:[%s4] sm:$0x1]
      %v706 = vperm.slane %v704, 0
      %v708 = vadd.f32 %v703, %v706
      %v709 = vmax.f32 %v708, 0.0
      %v710 = vld [vmem:[%s1] sm:$0x3]
      %v711 = vld [vmem:[%s5] sm:$0xf]
      %v712 = vld [vmem:[%s5 + $0x4] sm:$0xf]
      %v713 = vld [vmem:[%s5 + $0x8] sm:$0xf]
      %v714 = vld [vmem:[%s5 + $0xc] sm:$0xf]
      %v715 = vld [vmem:[%s5 + $0x10] sm:$0xf]
      %v716 = vld [vmem:[%s5 + $0x14] sm:$0xf]
      %v717 = vld [vmem:[%s5 + $0x18] sm:$0xf]
      %v718 = vld [vmem:[%s5 + $0x1c] sm:$0xf]
      %v719 = vld [vmem:[%s5 + $0x20] sm:$0xf]
      %v720 = vld [vmem:[%s5 + $0x24] sm:$0xf]
      %v721 = vld [vmem:[%s5 + $0x28] sm:$0xf]
      %v722 = vld [vmem:[%s5 + $0x2c] sm:$0xf]
      %v723 = vld [vmem:[%s5 + $0x30] sm:$0xf]
      %v724 = vld [vmem:[%s5 + $0x34] sm:$0xf]
      %v725 = vld [vmem:[%s5 + $0x38] sm:$0xf]
      %v726 = vld [vmem:[%s5 + $0x3c] sm:$0xf]
      %v727 = vld [vmem:[%s5 + $0x40] sm:$0xf]
      %v728 = vld [vmem:[%s5 + $0x44] sm:$0xf]
      %v729 = vld [vmem:[%s5 + $0x48] sm:$0xf]
      %v730 = vld [vmem:[%s5 + $0x4c] sm:$0xf]
      %v731 = vld [vmem:[%s5 + $0x50] sm:$0xf]
      %v732 = vld [vmem:[%s5 + $0x54] sm:$0xf]
      %v733 = vld [vmem:[%s5 + $0x58] sm:$0xf]
      %v734 = vld [vmem:[%s5 + $0x5c] sm:$0xf]
      %v735 = vld [vmem:[%s5 + $0x60] sm:$0xf]
      %v736 = vld [vmem:[%s5 + $0x64] sm:$0xf]
      %v737 = vld [vmem:[%s5 + $0x68] sm:$0xf]
      %v738 = vld [vmem:[%s5 + $0x6c] sm:$0xf]
      %v739 = vld [vmem:[%s5 + $0x70] sm:$0xf]
      %v740 = vld [vmem:[%s5 + $0x74] sm:$0xf]
      %v741 = vld [vmem:[%s5 + $0x78] sm:$0xf]
      %v742 = vld [vmem:[%s5 + $0x7c] sm:$0xf]
      %v743 = vld [vmem:[%s6] sm:$0x1]
      %v745 = vperm.slane %v743, 0
      %748 = vst [vmem:[#allocation1] ss:$9 sm:$0xff] %v710
      %v749 = vld [vmem:[#allocation1] sm:$0xff]
      %v750 = vld [vmem:[#allocation1 + $0x9] sm:$0xff]
      %v785 = vunpack.c.l.b16 %v711
      %v786 = vunpack.c.l.b16 %v712
      %v787 = vunpack.c.l.b16 %v713
      %v788 = vunpack.c.l.b16 %v714
      %v789 = vunpack.c.l.b16 %v715
      %v790 = vunpack.c.l.b16 %v716
      %v791 = vunpack.c.l.b16 %v717
      %v792 = vunpack.c.l.b16 %v718
      %v793 = vunpack.c.l.b16 %v719
      %v794 = vunpack.c.l.b16 %v720
      %v795 = vunpack.c.l.b16 %v721
      %v796 = vunpack.c.l.b16 %v722
      %v797 = vunpack.c.l.b16 %v723
      %v798 = vunpack.c.l.b16 %v724
      %v799 = vunpack.c.l.b16 %v725
      %v800 = vunpack.c.l.b16 %v726
      %v801 = vunpack.c.l.b16 %v727
      %v802 = vunpack.c.l.b16 %v728
      %v803 = vunpack.c.l.b16 %v729
      %v804 = vunpack.c.l.b16 %v730
      %v805 = vunpack.c.l.b16 %v731
      %v806 = vunpack.c.l.b16 %v732
      %v807 = vunpack.c.l.b16 %v733
      %v808 = vunpack.c.l.b16 %v734
      %v809 = vunpack.c.l.b16 %v735
      %v810 = vunpack.c.l.b16 %v736
      %v811 = vunpack.c.l.b16 %v737
      %v812 = vunpack.c.l.b16 %v738
      %v813 = vunpack.c.l.b16 %v739
      %v814 = vunpack.c.l.b16 %v740
      %v815 = vunpack.c.l.b16 %v741
      %v816 = vunpack.c.l.b16 %v742
      %v817 = vpack.c.b16 %v786, %v785
      %v818 = vpack.c.b16 %v788, %v787
      %v819 = vpack.c.b16 %v790, %v789
      %v820 = vpack.c.b16 %v792, %v791
      %v821 = vpack.c.b16 %v794, %v793
      %v822 = vpack.c.b16 %v796, %v795
      %v823 = vpack.c.b16 %v798, %v797
      %v824 = vpack.c.b16 %v800, %v799
      %v825 = vpack.c.b16 %v802, %v801
      %v826 = vpack.c.b16 %v804, %v803
      %v827 = vpack.c.b16 %v806, %v805
      %v828 = vpack.c.b16 %v808, %v807
      %v829 = vpack.c.b16 %v810, %v809
      %v830 = vpack.c.b16 %v812, %v811
      %v831 = vpack.c.b16 %v814, %v813
      %v832 = vpack.c.b16 %v816, %v815
      %849 = vmatpush.bf16.msra.mxu0 %v824
      %850 = vmatpush.bf16.msra.mxu0 %v823
      %851 = vmatpush.bf16.msra.mxu0 %v822
      %852 = vmatpush.bf16.msra.mxu0 %v821
      %853 = vmatpush.bf16.msra.mxu0 %v820
      %854 = vmatpush.bf16.msra.mxu0 %v819
      %855 = vmatpush.bf16.msra.mxu0 %v818
      %856 = vmatpush.bf16.msra.mxu0 %v817
      %857 = vmatmul.bf16.gmra.mxu0 %v749
      %v858 = vpop.f32.mrf.mxu0
      %v859 = vadd.f32 %v745, %v858
      %v860 = vpop.f32.mrf.mxu0
      %861 = vdwg.mxu0
      %862 = vmatpush.bf16.msra.mxu0 %v832
      %863 = vmatpush.bf16.msra.mxu0 %v831
      %864 = vmatpush.bf16.msra.mxu0 %v830
      %865 = vmatpush.bf16.msra.mxu0 %v829
      %866 = vmatpush.bf16.msra.mxu0 %v828
      %867 = vmatpush.bf16.msra.mxu0 %v827
      %868 = vmatpush.bf16.msra.mxu0 %v826
      %869 = vmatpush.bf16.msra.mxu0 %v825
      %870 = vmatmul.bf16.gmra.mxu0 %v750
      %v871 = vpop.f32.mrf.mxu0
      %v872 = vadd.f32 %v859, %v871
      %v873 = vpop.f32.mrf.mxu0
      %874 = vdwg.mxu0
      %v875 = vmax.f32 %v872, 0.0
      %v876 = vpack.c.bf16 %v709, %v709
      %v877 = vld [vmem:[%s7] sm:$0xf]
      %v878 = vld [vmem:[%s7 + $0x4] sm:$0xf]
      %v879 = vld [vmem:[%s7 + $0x8] sm:$0xf]
      %v880 = vld [vmem:[%s7 + $0xc] sm:$0xf]
      %v881 = vld [vmem:[%s7 + $0x10] sm:$0xf]
      %v882 = vld [vmem:[%s7 + $0x14] sm:$0xf]
      %v883 = vld [vmem:[%s7 + $0x18] sm:$0xf]
      %v884 = vld [vmem:[%s7 + $0x1c] sm:$0xf]
      %v885 = vld [vmem:[%s7 + $0x20] sm:$0xf]
      %v886 = vld [vmem:[%s7 + $0x24] sm:$0xf]
      %v887 = vld [vmem:[%s7 + $0x28] sm:$0xf]
      %v888 = vld [vmem:[%s7 + $0x2c] sm:$0xf]
      %v889 = vld [vmem:[%s7 + $0x30] sm:$0xf]
      %v890 = vld [vmem:[%s7 + $0x34] sm:$0xf]
      %v891 = vld [vmem:[%s7 + $0x38] sm:$0xf]
      %v892 = vld [vmem:[%s7 + $0x3c] sm:$0xf]
      %v893 = vpack.c.bf16 %v875, %v875
      %v894 = vld [vmem:[%s8] sm:$0xf]
      %v895 = vld [vmem:[%s8 + $0x4] sm:$0xf]
      %v896 = vld [vmem:[%s8 + $0x8] sm:$0xf]
      %v897 = vld [vmem:[%s8 + $0xc] sm:$0xf]
      %v898 = vld [vmem:[%s8 + $0x10] sm:$0xf]
      %v899 = vld [vmem:[%s8 + $0x14] sm:$0xf]
      %v900 = vld [vmem:[%s8 + $0x18] sm:$0xf]
      %v901 = vld [vmem:[%s8 + $0x1c] sm:$0xf]
      %v902 = vld [vmem:[%s8 + $0x20] sm:$0xf]
      %v903 = vld [vmem:[%s8 + $0x24] sm:$0xf]
      %v904 = vld [vmem:[%s8 + $0x28] sm:$0xf]
      %v905 = vld [vmem:[%s8 + $0x2c] sm:$0xf]
      %v906 = vld [vmem:[%s8 + $0x30] sm:$0xf]
      %v907 = vld [vmem:[%s8 + $0x34] sm:$0xf]
      %v908 = vld [vmem:[%s8 + $0x38] sm:$0xf]
      %v909 = vld [vmem:[%s8 + $0x3c] sm:$0xf]
      %v926 = vunpack.c.l.b16 %v894
      %v927 = vunpack.c.l.b16 %v895
      %v928 = vunpack.c.l.b16 %v896
      %v929 = vunpack.c.l.b16 %v897
      %v930 = vunpack.c.l.b16 %v898
      %v931 = vunpack.c.l.b16 %v899
      %v932 = vunpack.c.l.b16 %v900
      %v933 = vunpack.c.l.b16 %v901
      %v934 = vunpack.c.l.b16 %v902
      %v935 = vunpack.c.l.b16 %v903
      %v936 = vunpack.c.l.b16 %v904
      %v937 = vunpack.c.l.b16 %v905
      %v938 = vunpack.c.l.b16 %v906
      %v939 = vunpack.c.l.b16 %v907
      %v940 = vunpack.c.l.b16 %v908
      %v941 = vunpack.c.l.b16 %v909
      %v942 = vpack.c.b16 %v927, %v926
      %v943 = vpack.c.b16 %v929, %v928
      %v944 = vpack.c.b16 %v931, %v930
      %v945 = vpack.c.b16 %v933, %v932
      %v946 = vpack.c.b16 %v935, %v934
      %v947 = vpack.c.b16 %v937, %v936
      %v948 = vpack.c.b16 %v939, %v938
      %v949 = vpack.c.b16 %v941, %v940
      %958 = vmatpush.bf16.msra.mxu0 %v949
      %959 = vmatpush.bf16.msra.mxu0 %v948
      %960 = vmatpush.bf16.msra.mxu0 %v947
      %961 = vmatpush.bf16.msra.mxu0 %v946
      %962 = vmatpush.bf16.msra.mxu0 %v945
      %963 = vmatpush.bf16.msra.mxu0 %v944
      %964 = vmatpush.bf16.msra.mxu0 %v943
      %965 = vmatpush.bf16.msra.mxu0 %v942
      %966 = vmatmul.bf16.gmra.mxu0 %v893
      %v967 = vpop.f32.mrf.mxu0
      %v968 = vadd.f32 0.0, %v967
      %v969 = vpop.f32.mrf.mxu0
      %970 = vdwg.mxu0
      %v987 = vunpack.c.l.b16 %v877
      %v988 = vunpack.c.l.b16 %v878
      %v989 = vunpack.c.l.b16 %v879
      %v990 = vunpack.c.l.b16 %v880
      %v991 = vunpack.c.l.b16 %v881
      %v992 = vunpack.c.l.b16 %v882
      %v993 = vunpack.c.l.b16 %v883
      %v994 = vunpack.c.l.b16 %v884
      %v995 = vunpack.c.l.b16 %v885
      %v996 = vunpack.c.l.b16 %v886
      %v997 = vunpack.c.l.b16 %v887
      %v998 = vunpack.c.l.b16 %v888
      %v999 = vunpack.c.l.b16 %v889
      %v1000 = vunpack.c.l.b16 %v890
      %v1001 = vunpack.c.l.b16 %v891
      %v1002 = vunpack.c.l.b16 %v892
      %v1003 = vpack.c.b16 %v988, %v987
      %v1004 = vpack.c.b16 %v990, %v989
      %v1005 = vpack.c.b16 %v992, %v991
      %v1006 = vpack.c.b16 %v994, %v993
      %v1007 = vpack.c.b16 %v996, %v995
      %v1008 = vpack.c.b16 %v998, %v997
      %v1009 = vpack.c.b16 %v1000, %v999
      %v1010 = vpack.c.b16 %v1002, %v1001
      %1019 = vmatpush.bf16.msra.mxu0 %v1010
      %1020 = vmatpush.bf16.msra.mxu0 %v1009
      %1021 = vmatpush.bf16.msra.mxu0 %v1008
      %1022 = vmatpush.bf16.msra.mxu0 %v1007
      %1023 = vmatpush.bf16.msra.mxu0 %v1006
      %1024 = vmatpush.bf16.msra.mxu0 %v1005
      %1025 = vmatpush.bf16.msra.mxu0 %v1004
      %1026 = vmatpush.bf16.msra.mxu0 %v1003
      %1027 = vmatmul.bf16.gmra.mxu0 %v876
      %v1028 = vpop.f32.mrf.mxu0
      %v1029 = vadd.f32 %v968, %v1028
      %v1030 = vpop.f32.mrf.mxu0
      %1031 = vdwg.mxu0
      %v1032 = vld [vmem:[%s2] sm:$0x1]
      %v1033 = vld [vmem:[%s9] sm:$0xf]
      %v1034 = vld [vmem:[%s9 + $0x4] sm:$0xf]
      %v1035 = vld [vmem:[%s9 + $0x8] sm:$0xf]
      %v1036 = vld [vmem:[%s9 + $0xc] sm:$0xf]
      %v1037 = vld [vmem:[%s9 + $0x10] sm:$0xf]
      %v1038 = vld [vmem:[%s9 + $0x14] sm:$0xf]
      %v1039 = vld [vmem:[%s9 + $0x18] sm:$0xf]
      %v1040 = vld [vmem:[%s9 + $0x1c] sm:$0xf]
      %v1041 = vld [vmem:[%s9 + $0x20] sm:$0xf]
      %v1042 = vld [vmem:[%s9 + $0x24] sm:$0xf]
      %v1043 = vld [vmem:[%s9 + $0x28] sm:$0xf]
      %v1044 = vld [vmem:[%s9 + $0x2c] sm:$0xf]
      %v1045 = vld [vmem:[%s9 + $0x30] sm:$0xf]
      %v1046 = vld [vmem:[%s9 + $0x34] sm:$0xf]
      %v1047 = vld [vmem:[%s9 + $0x38] sm:$0xf]
      %v1048 = vld [vmem:[%s9 + $0x3c] sm:$0xf]
      %v1065 = vunpack.c.l.b16 %v1033
      %v1066 = vunpack.c.l.b16 %v1034
      %v1067 = vunpack.c.l.b16 %v1035
      %v1068 = vunpack.c.l.b16 %v1036
      %v1069 = vunpack.c.l.b16 %v1037
      %v1070 = vunpack.c.l.b16 %v1038
      %v1071 = vunpack.c.l.b16 %v1039
      %v1072 = vunpack.c.l.b16 %v1040
      %v1073 = vunpack.c.l.b16 %v1041
      %v1074 = vunpack.c.l.b16 %v1042
      %v1075 = vunpack.c.l.b16 %v1043
      %v1076 = vunpack.c.l.b16 %v1044
      %v1077 = vunpack.c.l.b16 %v1045
      %v1078 = vunpack.c.l.b16 %v1046
      %v1079 = vunpack.c.l.b16 %v1047
      %v1080 = vunpack.c.l.b16 %v1048
      %v1081 = vpack.c.b16 %v1066, %v1065
      %v1082 = vpack.c.b16 %v1068, %v1067
      %v1083 = vpack.c.b16 %v1070, %v1069
      %v1084 = vpack.c.b16 %v1072, %v1071
      %v1085 = vpack.c.b16 %v1074, %v1073
      %v1086 = vpack.c.b16 %v1076, %v1075
      %v1087 = vpack.c.b16 %v1078, %v1077
      %v1088 = vpack.c.b16 %v1080, %v1079
      %1097 = vmatpush.bf16.msra.mxu0 %v1088
      %1098 = vmatpush.bf16.msra.mxu0 %v1087
      %1099 = vmatpush.bf16.msra.mxu0 %v1086
      %1100 = vmatpush.bf16.msra.mxu0 %v1085
      %1101 = vmatpush.bf16.msra.mxu0 %v1084
      %1102 = vmatpush.bf16.msra.mxu0 %v1083
      %1103 = vmatpush.bf16.msra.mxu0 %v1082
      %1104 = vmatpush.bf16.msra.mxu0 %v1081
      %1105 = vmatmul.bf16.gmra.mxu0 %v1032
      %v1106 = vpop.f32.mrf.mxu0
      %v1107 = vadd.f32 0.0, %v1106
      %v1108 = vpop.f32.mrf.mxu0
      %1109 = vdwg.mxu0
      %v1110 = vadd.f32 %v1029, %v1107
      %v1111 = vld [vmem:[%s10] sm:$0x1]
      %v1113 = vperm.slane %v1111, 0
      %v1115 = vadd.f32 %v1110, %v1113
      %v1116 = vmax.f32 %v1115, 0.0
      %v1117 = vpack.c.bf16 %v1116, %v1116
      %v1118 = vld [vmem:[%s11] sm:$0xf]
      %v1119 = vld [vmem:[%s11 + $0x4] sm:$0xf]
      %v1120 = vld [vmem:[%s11 + $0x8] sm:$0xf]
      %v1121 = vld [vmem:[%s11 + $0xc] sm:$0xf]
      %v1122 = vld [vmem:[%s11 + $0x10] sm:$0xf]
      %v1123 = vld [vmem:[%s11 + $0x14] sm:$0xf]
      %v1124 = vld [vmem:[%s11 + $0x18] sm:$0xf]
      %v1125 = vld [vmem:[%s11 + $0x1c] sm:$0xf]
      %v1126 = vld [vmem:[%s11 + $0x20] sm:$0xf]
      %v1127 = vld [vmem:[%s11 + $0x24] sm:$0xf]
      %v1128 = vld [vmem:[%s11 + $0x28] sm:$0xf]
      %v1129 = vld [vmem:[%s11 + $0x2c] sm:$0xf]
      %v1130 = vld [vmem:[%s11 + $0x30] sm:$0xf]
      %v1131 = vld [vmem:[%s11 + $0x34] sm:$0xf]
      %v1132 = vld [vmem:[%s11 + $0x38] sm:$0xf]
      %v1133 = vld [vmem:[%s11 + $0x3c] sm:$0xf]
      %v1134 = vld [vmem:[%s12] sm:$0x1]
      %v1136 = vperm.slane %v1134, 0
      %v1154 = vunpack.c.l.b16 %v1118
      %v1155 = vunpack.c.l.b16 %v1119
      %v1156 = vunpack.c.l.b16 %v1120
      %v1157 = vunpack.c.l.b16 %v1121
      %v1158 = vunpack.c.l.b16 %v1122
      %v1159 = vunpack.c.l.b16 %v1123
      %v1160 = vunpack.c.l.b16 %v1124
      %v1161 = vunpack.c.l.b16 %v1125
      %v1162 = vunpack.c.l.b16 %v1126
      %v1163 = vunpack.c.l.b16 %v1127
      %v1164 = vunpack.c.l.b16 %v1128
      %v1165 = vunpack.c.l.b16 %v1129
      %v1166 = vunpack.c.l.b16 %v1130
      %v1167 = vunpack.c.l.b16 %v1131
      %v1168 = vunpack.c.l.b16 %v1132
      %v1169 = vunpack.c.l.b16 %v1133
      %v1170 = vpack.c.b16 %v1155, %v1154
      %v1171 = vpack.c.b16 %v1157, %v1156
      %v1172 = vpack.c.b16 %v1159, %v1158
      %v1173 = vpack.c.b16 %v1161, %v1160
      %v1174 = vpack.c.b16 %v1163, %v1162
      %v1175 = vpack.c.b16 %v1165, %v1164
      %v1176 = vpack.c.b16 %v1167, %v1166
      %v1177 = vpack.c.b16 %v1169, %v1168
      %1186 = vmatpush.bf16.msra.mxu0 %v1177
      %1187 = vmatpush.bf16.msra.mxu0 %v1176
      %1188 = vmatpush.bf16.msra.mxu0 %v1175
      %1189 = vmatpush.bf16.msra.mxu0 %v1174
      %1190 = vmatpush.bf16.msra.mxu0 %v1173
      %1191 = vmatpush.bf16.msra.mxu0 %v1172
      %1192 = vmatpush.bf16.msra.mxu0 %v1171
      %1193 = vmatpush.bf16.msra.mxu0 %v1170
      %1194 = vmatmul.bf16.gmra.mxu0 %v1117
      %v1195 = vpop.f32.mrf.mxu0
      %v1196 = vadd.f32 %v1136, %v1195
      %v1197 = vpop.f32.mrf.mxu0
      %1198 = vdwg.mxu0
      %1199 = vst [vmem:[#allocation3] sm:$0x3] %v1196
    $region61: #{_forward_impl.1} parent=1 // pred_fallthru
      _
    // Predicated region
    $region62: #{_forward_impl.1} parent=1 // pred_check
      _
    $region63: #{_forward_impl.1} parent=1 // pred_check_branch
      %1201 = sbr.rel (0) target = $region65
    $region64: #{_forward_impl.1} parent=1 // pred_region
      %1203 = vsyncadd [#allocation4], 0
      %s1205 = sshll.u32 [#allocation3], 4
      %s1206 = int_to_ptr.vmem [resolvable:$true] %s1205
      %s1207 = sshll.u32 %s13, 4
      %s1208 = int_to_ptr.hbm [resolvable:$true] %s1207
      %1210 = dma.vmem_to_hbm [thread:$0]  %s1206, 32, %s1208, [#allocation4]
    $region65: #{_forward_impl.1} parent=1 // pred_fallthru
      _
    // Predicated region
    $region66: #{_forward_impl.1} parent=1 // pred_check
      _
    $region67: #{_forward_impl.1} parent=1 // pred_check_branch
      %1212 = sbr.rel (0) target = $region69
    $region68: #{_forward_impl.1} parent=1 // pred_region
      %1214 = dma.done [#allocation4], 32
    $region69: #{_forward_impl.1} parent=1 // pred_fallthru
      _
    %1215 = vsyncpa [#allocation4], 1

</llo_original>
